<compile_context>
chip_gen: v6e
topology: v6e:2x2x1
jax: 0.10.0
libtpu: 0.0.40
codegen_flags: <defaults>
</compile_context>

<pallas_src>
import functools

import jax
import jax.numpy as jnp
from jax.experimental import pallas as pl
from jax.experimental.pallas import tpu as pltpu


def _hardswish(x):
    return x * jnp.clip(x + 3.0, 0.0, 6.0) * (1.0 / 6.0)


def st_part_att_kernel(x_ref, red_ref, et_ref, gf_ref,
                       w1_ref, wt_ref, wv_ref, ps_ref, bnb_ref, o_ref, *, T):
    NB, C, TV = x_ref.shape
    inner = wt_ref.shape[0]

    x_bf = x_ref[...]                                   # (NB, C, TV)  bf16, lane-dense
    x = x_bf.astype(jnp.float32)

    # --- packed per-channel vectors (lane-oriented rows of the slab) ---
    b1f = ps_ref[0:1, 0:inner][None]                    # (1, 1, inner)  fcn bias (BN folded)
    bt = ps_ref[1:2, 0:C][None]                         # (1, 1, C)      conv_t bias
    bv = ps_ref[2:3, 0:C][None]                         # (1, 1, C)      conv_v bias
    bns = ps_ref[3:4, 0:C][None]                        # (1, 1, C)      final BN scale

    # --- frame-mean (over V) and part-mean (over T, joints->parts) as one bf16 MXU matmul ---
    xr = jnp.einsum('bcf,fk->bck', x_bf, red_ref[...],
                    preferred_element_type=jnp.float32)             # (NB, C, T+P)

    # --- fcn 1x1 conv (fcn BN folded in) + Hardswish, batched over NB ---
    h = jnp.einsum('bck,ci->bki', xr, w1_ref[...],
                   preferred_element_type=jnp.float32) + b1f        # (NB, T+P, inner)
    h = _hardswish(h)
    h_t = h[:, :T, :]                                   # (NB, T, inner)
    h_p = h[:, T:, :]                                   # (NB, P, inner)

    # --- conv_t / conv_v + sigmoid; fold final-BN scale into the frame attention ---
    t_att = jax.nn.sigmoid(
        jnp.einsum('bti,ic->btc', h_t, wt_ref[...],
                   preferred_element_type=jnp.float32) + bt)        # (NB, T, C)
    p_att = jax.nn.sigmoid(
        jnp.einsum('bpi,ic->bpc', h_p, wv_ref[...],
                   preferred_element_type=jnp.float32) + bv)        # (NB, P, C)
    t_att = t_att * bns                                              # BN scale folded

    # --- broadcast both attentions onto the flattened lane-dense (T*V) axis via MXU ---
    # t_rep[b, c, t*V+v] = t_att[b, t, c] ;  v_rep[b, c, t*V+v] = p_att[b, joints[v], c]
    t_rep = jnp.einsum('btc,tf->bcf', t_att, et_ref[...],
                       preferred_element_type=jnp.float32)           # (NB, C, TV)
    v_rep = jnp.einsum('bpc,pf->bcf', p_att, gf_ref[...],
                       preferred_element_type=jnp.float32)           # (NB, C, TV)

    # --- apply attention + BN shift + residual + Swish, all lane-dense (VPU) ---
    y = x * (t_rep * v_rep + 1.0) + bnb_ref[...][None]               # bn(x*att) + x, folded
    o_ref[...] = (y * jax.nn.sigmoid(y)).astype(o_ref.dtype)


def st_part_att(x, mat, joints, params, *, nb=None,
                vmem_budget_bytes=24 * 1024 * 1024):
    """x: (N, C, T, V) float (bf16 preferred). mat: (V, P) joint->part mean matrix.
    joints: (V,) int32 joint->part index. params: raw conv weights + BN affines."""
    N, C, T, V = x.shape
    P = mat.shape[1]
    K = T + P
    TV = T * V
    inner = params["w1"].shape[0]
    f32 = jnp.float32

    # ---- fold fcn BN into the 1x1 conv (inference semantics) ----
    s1 = params["s1"].astype(f32)                       # (inner, 1)
    w1f = s1 * params["w1"].astype(f32)                 # (inner, C)
    b1f = s1 * params["b1"].astype(f32) + params["t1"].astype(f32)   # (inner, 1)

    # weights transposed so every in-kernel dot is in natural (transpose-free) order
    w1_ci = w1f.T                                       # (C, inner)
    wt_ic = params["wt"].astype(f32).T                  # (inner, C)
    wv_ic = params["wv"].astype(f32).T                  # (inner, C)

    # ---- pack the small per-channel vectors into one slab (+ one column for BN shift) ----
    L = max(C, inner)
    pslab = jnp.zeros((4, L), f32)
    pslab = pslab.at[0, :inner].set(b1f[:, 0])
    pslab = pslab.at[1, :C].set(params["bt"].astype(f32)[:, 0])
    pslab = pslab.at[2, :C].set(params["bv"].astype(f32)[:, 0])
    pslab = pslab.at[3, :C].set(params["bn_scale"].astype(f32)[:, 0])
    bnb = params["bn_shift"].astype(f32).reshape(C, 1)

    # ---- constant reduce / gather / broadcast matrices on the flattened T*V axis ----
    eye_t = jnp.eye(T, dtype=f32)
    r_t = jnp.repeat(eye_t, V, axis=0) / V              # (TV, T): per-frame mean over joints
    r_p = jnp.tile(mat.astype(f32), (T, 1)) / T         # (TV, P): mean over frames + joint->part
    red = jnp.concatenate([r_t, r_p], axis=1).astype(jnp.bfloat16)   # (TV, T+P)

    e_t = jnp.kron(eye_t, jnp.ones((1, V), f32))        # (T, TV): frame att -> all its joints
    onehot = (jnp.arange(P, dtype=joints.dtype)[:, None]
              == joints[None, :]).astype(f32)           # (P, V): index_select as one-hot
    g_f = jnp.tile(onehot, (1, T))                      # (P, TV): part att -> joints, all frames

    # ---- lane-dense bf16 view of x ----
    x_flat = x.astype(jnp.bfloat16).reshape(N, C, TV)

    # ---- pick samples-per-block: fill VMEM (v7x-safe budget) but keep >=2 grid steps ----
    per_sample_bytes = C * TV * 32        # bf16 in/out double-buffered + f32 temporaries
    if nb is None:
        nb = max(1, int(vmem_budget_bytes // per_sample_bytes))
    nb = min(nb, N)
    while nb > 1 and (N % nb != 0 or N // nb < 2):
        nb -= 1

    out_flat = pl.pallas_call(
        functools.partial(st_part_att_kernel, T=T),
        out_shape=jax.ShapeDtypeStruct((N, C, TV), jnp.bfloat16),
        grid=(N // nb,),
        in_specs=[
            pl.BlockSpec((nb, C, TV), lambda n: (n, 0, 0)),   # x (bf16, lane-dense)
            pl.BlockSpec((TV, K), lambda n: (0, 0)),          # reduce matrix (bf16)
            pl.BlockSpec((T, TV), lambda n: (0, 0)),          # frame broadcast matrix
            pl.BlockSpec((P, TV), lambda n: (0, 0)),          # part gather+broadcast matrix
            pl.BlockSpec((C, inner), lambda n: (0, 0)),       # fcn conv weight (folded, T)
            pl.BlockSpec((inner, C), lambda n: (0, 0)),       # conv_t weight (T)
            pl.BlockSpec((inner, C), lambda n: (0, 0)),       # conv_v weight (T)
            pl.BlockSpec((4, L), lambda n: (0, 0)),           # packed bias/affine slab
            pl.BlockSpec((C, 1), lambda n: (0, 0)),           # final BN shift (column)
        ],
        out_specs=pl.BlockSpec((nb, C, TV), lambda n: (n, 0, 0)),
        compiler_params=pltpu.CompilerParams(
            dimension_semantics=("parallel",),
            vmem_limit_bytes=48 * 1024 * 1024),
    )(x_flat, red, e_t, g_f, w1_ci, wt_ic, wv_ic, pslab, bnb)

    return out_flat.reshape(N, C, T, V)


# -------------------- pure-JAX reference (mirrors the PyTorch forward) --------------------
def st_part_att_ref(x, mat, joints, params):
    N, C, T, V = x.shape
    x_t = jnp.mean(x, axis=3, keepdims=True)                          # (N, C, T, 1)
    x_p = jnp.einsum("nctv,vp->nctp", jnp.mean(x, axis=2, keepdims=True), mat)
    x_p = jnp.swapaxes(x_p, 2, 3)                                     # (N, C, P, 1)
    x_cat = jnp.concatenate([x_t, x_p], axis=2)                       # (N, C, T+P, 1)

    h = jnp.einsum("ic,nctv->nitv", params["w1"], x_cat) + params["b1"][None, :, :, None]
    h = params["s1"][None, :, :, None] * h + params["t1"][None, :, :, None]
    h = _hardswish(h)
    h_t, h_p = h[:, :, :T, :], h[:, :, T:, :]

    t_att = jax.nn.sigmoid(jnp.einsum("ci,nitv->nctv", params["wt"], h_t)
                           + params["bt"][None, :, :, None])          # (N, C, T, 1)
    p_att = jax.nn.sigmoid(jnp.einsum("ci,nitv->nctv", params["wv"],
                                      jnp.swapaxes(h_p, 2, 3))
                           + params["bv"][None, :, :, None])          # (N, C, 1, P)
    v_att = jnp.take(p_att, joints, axis=3)                           # (N, C, 1, V)
    x_att = t_att * v_att
    y = params["bn_scale"][None, :, :, None] * (x * x_att) + params["bn_shift"][None, :, :, None]
    y = y + x
    return y * jax.nn.sigmoid(y)


if __name__ == "__main__":
    # Small config consistent with the module: N=8, C=16, T=16, V=16, 4 parts, reduct_ratio=4
    N, C, T, V = 8, 16, 16, 16
    parts = [[0, 1, 2, 3], [4, 5, 6, 7], [8, 9, 10, 11], [12, 13, 14, 15]]
    P = len(parts)
    reduct_ratio = 4
    inner = C // reduct_ratio
    eps = 1e-5

    # joints (joint -> part index) and mean matrix Q (V, P), same as the PyTorch module
    joints = jnp.array([p for v in range(V) for p in range(P) if v in parts[p]], dtype=jnp.int32)
    mat = jnp.zeros((V, P), dtype=jnp.float32)
    for p in range(P):
        for v in parts[p]:
            mat = mat.at[v, p].set(1.0 / len(parts[p]))

    key = jax.random.PRNGKey(0)
    ks = jax.random.split(key, 16)

    def rnd(k, shape, scale=0.1):
        return (scale * jax.random.normal(k, shape)).astype(jnp.float32)

    # fcn conv (bias=True) + BN(inner) folded to affine (inference semantics)
    w1 = rnd(ks[0], (inner, C))
    b1 = rnd(ks[1], (inner, 1))
    g1 = 1.0 + rnd(ks[2], (inner, 1))
    be1 = rnd(ks[3], (inner, 1))
    rm1 = rnd(ks[4], (inner, 1))
    rv1 = 1.0 + 0.1 * jnp.abs(jax.random.normal(ks[5], (inner, 1))).astype(jnp.float32)
    s1 = g1 / jnp.sqrt(rv1 + eps)
    t1 = be1 - rm1 * s1

    wt = rnd(ks[6], (C, inner))
    bt = rnd(ks[7], (C, 1))
    wv = rnd(ks[8], (C, inner))
    bv = rnd(ks[9], (C, 1))

    # final BN(C) folded to affine (inference semantics)
    g2 = 1.0 + rnd(ks[10], (C, 1))
    be2 = rnd(ks[11], (C, 1))
    rm2 = rnd(ks[12], (C, 1))
    rv2 = 1.0 + 0.1 * jnp.abs(jax.random.normal(ks[13], (C, 1))).astype(jnp.float32)
    bn_scale = g2 / jnp.sqrt(rv2 + eps)
    bn_shift = be2 - rm2 * bn_scale

    params = dict(w1=w1, b1=b1, s1=s1, t1=t1, wt=wt, bt=bt, wv=wv, bv=bv,
                  bn_scale=bn_scale, bn_shift=bn_shift)

    x_f32 = jax.random.normal(ks[14], (N, C, T, V), dtype=jnp.float32)
    x_bf16 = x_f32.astype(jnp.bfloat16)                 # bf16 I/O at the kernel boundary

    out = st_part_att(x_bf16, mat, joints, params)
    out = jax.block_until_ready(out)

    ref = st_part_att_ref(x_bf16.astype(jnp.float32), mat, joints, params)
    out_f32 = out.astype(jnp.float32)

    assert out.shape == (N, C, T, V)
    assert bool(jnp.all(jnp.isfinite(out_f32)))
    assert bool(jnp.allclose(out_f32, ref, atol=2e-2, rtol=2e-2)), \
        float(jnp.max(jnp.abs(out_f32 - ref)))

    print("KERNEL_OK")
</pallas_src>

<mosaic_0001>
module attributes {stable_mosaic.version = 11 : i64} {
  func.func @st_part_att_kernel(%arg0: i32, %arg1: memref<4x16x256xbf16, #tpu.memory_space<vmem>>, %arg2: memref<256x20xbf16, #tpu.memory_space<vmem>>, %arg3: memref<16x256xf32, #tpu.memory_space<vmem>>, %arg4: memref<4x256xf32, #tpu.memory_space<vmem>>, %arg5: memref<16x4xf32, #tpu.memory_space<vmem>>, %arg6: memref<4x16xf32, #tpu.memory_space<vmem>>, %arg7: memref<4x16xf32, #tpu.memory_space<vmem>>, %arg8: memref<4x16xf32, #tpu.memory_space<vmem>>, %arg9: memref<16x1xf32, #tpu.memory_space<vmem>>, %arg10: memref<4x16x256xbf16, #tpu.memory_space<vmem>>) attributes {dimension_semantics = [#tpu.dimension_semantics<parallel>], iteration_bounds = array<i64: 2>, scalar_prefetch = 0 : i64, scratch_operands = 0 : i64, tpu.core_type = #tpu.core_type<tc>, window_params = [{transform_indices = @transform_0, window_bounds = array<i64: 4, 16, 256>}, {pipeline_mode = #tpu.pipeline_mode<synchronous>, transform_indices = @transform_1, window_bounds = array<i64: 256, 20>}, {pipeline_mode = #tpu.pipeline_mode<synchronous>, transform_indices = @transform_2, window_bounds = array<i64: 16, 256>}, {pipeline_mode = #tpu.pipeline_mode<synchronous>, transform_indices = @transform_3, window_bounds = array<i64: 4, 256>}, {pipeline_mode = #tpu.pipeline_mode<synchronous>, transform_indices = @transform_4, window_bounds = array<i64: 16, 4>}, {pipeline_mode = #tpu.pipeline_mode<synchronous>, transform_indices = @transform_5, window_bounds = array<i64: 4, 16>}, {pipeline_mode = #tpu.pipeline_mode<synchronous>, transform_indices = @transform_6, window_bounds = array<i64: 4, 16>}, {pipeline_mode = #tpu.pipeline_mode<synchronous>, transform_indices = @transform_7, window_bounds = array<i64: 4, 16>}, {pipeline_mode = #tpu.pipeline_mode<synchronous>, transform_indices = @transform_8, window_bounds = array<i64: 16, 1>}, {transform_indices = @transform_9, window_bounds = array<i64: 4, 16, 256>}]} {
    %c0 = arith.constant 0 : index
    %c0_0 = arith.constant 0 : index
    %c0_1 = arith.constant 0 : index
    %0 = vector.load %arg1[%c0, %c0_0, %c0_1] : memref<4x16x256xbf16, #tpu.memory_space<vmem>>, vector<4x16x256xbf16>
    %1 = arith.extf %0 : vector<4x16x256xbf16> to vector<4x16x256xf32>
    %c0_2 = arith.constant 0 : index
    %c0_3 = arith.constant 0 : index
    %2 = vector.load %arg8[%c0_2, %c0_3] : memref<4x16xf32, #tpu.memory_space<vmem>>, vector<1x4xf32>
    %3 = vector.shape_cast %2 : vector<1x4xf32> to vector<1x1x4xf32>
    %c1 = arith.constant 1 : index
    %c0_4 = arith.constant 0 : index
    %4 = vector.load %arg8[%c1, %c0_4] : memref<4x16xf32, #tpu.memory_space<vmem>>, vector<1x16xf32>
    %5 = vector.shape_cast %4 : vector<1x16xf32> to vector<1x1x16xf32>
    %c2 = arith.constant 2 : index
    %c0_5 = arith.constant 0 : index
    %6 = vector.load %arg8[%c2, %c0_5] : memref<4x16xf32, #tpu.memory_space<vmem>>, vector<1x16xf32>
    %7 = vector.shape_cast %6 : vector<1x16xf32> to vector<1x1x16xf32>
    %c3 = arith.constant 3 : index
    %c0_6 = arith.constant 0 : index
    %8 = vector.load %arg8[%c3, %c0_6] : memref<4x16xf32, #tpu.memory_space<vmem>>, vector<1x16xf32>
    %9 = vector.shape_cast %8 : vector<1x16xf32> to vector<1x1x16xf32>
    %c0_7 = arith.constant 0 : index
    %c0_8 = arith.constant 0 : index
    %10 = vector.load %arg2[%c0_7, %c0_8] : memref<256x20xbf16, #tpu.memory_space<vmem>>, vector<256x20xbf16>
    "tpu.trace_start"() <{level = 10 : i32, message = "bcf,fk->bck"}> : () -> ()
    %cst = arith.constant dense<0.000000e+00> : vector<4x16x20xf32>
    %11 = tpu.matmul %0, %10, %cst {dimension_numbers = #tpu.dot_dimension_numbers<[2], [0], [0, 1], [1], [0, 0, 0, 1, 1, 1], [], []>} : vector<4x16x256xbf16>, vector<256x20xbf16>, vector<4x16x20xf32> -> vector<4x16x20xf32>
    "tpu.trace_stop"() : () -> ()
    %c0_9 = arith.constant 0 : index
    %c0_10 = arith.constant 0 : index
    %12 = vector.load %arg5[%c0_9, %c0_10] : memref<16x4xf32, #tpu.memory_space<vmem>>, vector<16x4xf32>
    "tpu.trace_start"() <{level = 10 : i32, message = "bck,ci->bki"}> : () -> ()
    %cst_11 = arith.constant dense<0.000000e+00> : vector<4x20x4xf32>
    %13 = tpu.matmul %11, %12, %cst_11 {dimension_numbers = #tpu.dot_dimension_numbers<[1], [0], [0, 2], [1], [0, 0, 0, 2, 1, 1], [], []>} : vector<4x16x20xf32>, vector<16x4xf32>, vector<4x20x4xf32> -> vector<4x20x4xf32>
    "tpu.trace_stop"() : () -> ()
    %14 = vector.broadcast %3 : vector<1x1x4xf32> to vector<4x20x4xf32>
    %15 = arith.addf %13, %14 : vector<4x20x4xf32>
    %cst_12 = arith.constant 3.000000e+00 : f32
    %16 = vector.broadcast %cst_12 : f32 to vector<4x20x4xf32>
    %17 = arith.addf %15, %16 : vector<4x20x4xf32>
    %cst_13 = arith.constant 0.000000e+00 : f32
    %cst_14 = arith.constant 6.000000e+00 : f32
    %18 = vector.broadcast %cst_13 : f32 to vector<4x20x4xf32>
    %19 = arith.maximumf %18, %17 : vector<4x20x4xf32>
    %20 = vector.broadcast %cst_14 : f32 to vector<4x20x4xf32>
    %21 = arith.minimumf %20, %19 : vector<4x20x4xf32>
    %22 = arith.mulf %15, %21 : vector<4x20x4xf32>
    %cst_15 = arith.constant 0.166666672 : f32
    %23 = vector.broadcast %cst_15 : f32 to vector<4x20x4xf32>
    %24 = arith.mulf %22, %23 : vector<4x20x4xf32>
    %25 = vector.extract_strided_slice %24 {offsets = [0, 0, 0], sizes = [4, 16, 4], strides = [1, 1, 1]} : vector<4x20x4xf32> to vector<4x16x4xf32>
    %26 = vector.extract_strided_slice %24 {offsets = [0, 16, 0], sizes = [4, 4, 4], strides = [1, 1, 1]} : vector<4x20x4xf32> to vector<4x4x4xf32>
    %c0_16 = arith.constant 0 : index
    %c0_17 = arith.constant 0 : index
    %27 = vector.load %arg6[%c0_16, %c0_17] : memref<4x16xf32, #tpu.memory_space<vmem>>, vector<4x16xf32>
    "tpu.trace_start"() <{level = 10 : i32, message = "bti,ic->btc"}> : () -> ()
    %cst_18 = arith.constant dense<0.000000e+00> : vector<4x16x16xf32>
    %28 = tpu.matmul %25, %27, %cst_18 {dimension_numbers = #tpu.dot_dimension_numbers<[2], [0], [0, 1], [1], [0, 0, 0, 1, 1, 1], [], []>} : vector<4x16x4xf32>, vector<4x16xf32>, vector<4x16x16xf32> -> vector<4x16x16xf32>
    "tpu.trace_stop"() : () -> ()
    %29 = vector.broadcast %5 : vector<1x1x16xf32> to vector<4x16x16xf32>
    %30 = arith.addf %28, %29 : vector<4x16x16xf32>
    %31 = arith.negf %30 : vector<4x16x16xf32>
    %32 = math.exp %31 : vector<4x16x16xf32>
    %cst_19 = arith.constant 1.000000e+00 : f32
    %33 = vector.broadcast %cst_19 : f32 to vector<4x16x16xf32>
    %34 = arith.addf %33, %32 : vector<4x16x16xf32>
    %35 = arith.divf %33, %34 : vector<4x16x16xf32>
    %c0_20 = arith.constant 0 : index
    %c0_21 = arith.constant 0 : index
    %36 = vector.load %arg7[%c0_20, %c0_21] : memref<4x16xf32, #tpu.memory_space<vmem>>, vector<4x16xf32>
    "tpu.trace_start"() <{level = 10 : i32, message = "bpi,ic->bpc"}> : () -> ()
    %cst_22 = arith.constant dense<0.000000e+00> : vector<4x4x16xf32>
    %37 = tpu.matmul %26, %36, %cst_22 {dimension_numbers = #tpu.dot_dimension_numbers<[2], [0], [0, 1], [1], [0, 0, 0, 1, 1, 1], [], []>} : vector<4x4x4xf32>, vector<4x16xf32>, vector<4x4x16xf32> -> vector<4x4x16xf32>
    "tpu.trace_stop"() : () -> ()
    %38 = vector.broadcast %7 : vector<1x1x16xf32> to vector<4x4x16xf32>
    %39 = arith.addf %37, %38 : vector<4x4x16xf32>
    %40 = arith.negf %39 : vector<4x4x16xf32>
    %41 = math.exp %40 : vector<4x4x16xf32>
    %cst_23 = arith.constant 1.000000e+00 : f32
    %42 = vector.broadcast %cst_23 : f32 to vector<4x4x16xf32>
    %43 = arith.addf %42, %41 : vector<4x4x16xf32>
    %44 = arith.divf %42, %43 : vector<4x4x16xf32>
    %45 = vector.broadcast %9 : vector<1x1x16xf32> to vector<4x16x16xf32>
    %46 = arith.mulf %35, %45 : vector<4x16x16xf32>
    %c0_24 = arith.constant 0 : index
    %c0_25 = arith.constant 0 : index
    %47 = vector.load %arg3[%c0_24, %c0_25] : memref<16x256xf32, #tpu.memory_space<vmem>>, vector<16x256xf32>
    "tpu.trace_start"() <{level = 10 : i32, message = "btc,tf->bcf"}> : () -> ()
    %cst_26 = arith.constant dense<0.000000e+00> : vector<4x16x256xf32>
    %48 = tpu.matmul %46, %47, %cst_26 {dimension_numbers = #tpu.dot_dimension_numbers<[1], [0], [0, 2], [1], [0, 0, 0, 2, 1, 1], [], []>} : vector<4x16x16xf32>, vector<16x256xf32>, vector<4x16x256xf32> -> vector<4x16x256xf32>
    "tpu.trace_stop"() : () -> ()
    %c0_27 = arith.constant 0 : index
    %c0_28 = arith.constant 0 : index
    %49 = vector.load %arg4[%c0_27, %c0_28] : memref<4x256xf32, #tpu.memory_space<vmem>>, vector<4x256xf32>
    "tpu.trace_start"() <{level = 10 : i32, message = "bpc,pf->bcf"}> : () -> ()
    %cst_29 = arith.constant dense<0.000000e+00> : vector<4x16x256xf32>
    %50 = tpu.matmul %44, %49, %cst_29 {dimension_numbers = #tpu.dot_dimension_numbers<[1], [0], [0, 2], [1], [0, 0, 0, 2, 1, 1], [], []>} : vector<4x4x16xf32>, vector<4x256xf32>, vector<4x16x256xf32> -> vector<4x16x256xf32>
    "tpu.trace_stop"() : () -> ()
    %51 = arith.mulf %48, %50 : vector<4x16x256xf32>
    %cst_30 = arith.constant 1.000000e+00 : f32
    %52 = vector.broadcast %cst_30 : f32 to vector<4x16x256xf32>
    %53 = arith.addf %51, %52 : vector<4x16x256xf32>
    %54 = arith.mulf %1, %53 : vector<4x16x256xf32>
    %c0_31 = arith.constant 0 : index
    %c0_32 = arith.constant 0 : index
    %55 = vector.load %arg9[%c0_31, %c0_32] : memref<16x1xf32, #tpu.memory_space<vmem>>, vector<16x1xf32>
    %56 = vector.shape_cast %55 : vector<16x1xf32> to vector<1x16x1xf32>
    %57 = vector.broadcast %56 : vector<1x16x1xf32> to vector<4x16x256xf32>
    %58 = arith.addf %54, %57 : vector<4x16x256xf32>
    %59 = arith.negf %58 : vector<4x16x256xf32>
    %60 = math.exp %59 : vector<4x16x256xf32>
    %cst_33 = arith.constant 1.000000e+00 : f32
    %61 = vector.broadcast %cst_33 : f32 to vector<4x16x256xf32>
    %62 = arith.addf %61, %60 : vector<4x16x256xf32>
    %63 = arith.divf %61, %62 : vector<4x16x256xf32>
    %64 = arith.mulf %58, %63 : vector<4x16x256xf32>
    %65 = arith.truncf %64 : vector<4x16x256xf32> to vector<4x16x256xbf16>
    %c0_34 = arith.constant 0 : index
    %c0_35 = arith.constant 0 : index
    %c0_36 = arith.constant 0 : index
    %66 = vector.load %arg10[%c0_34, %c0_35, %c0_36] : memref<4x16x256xbf16, #tpu.memory_space<vmem>>, vector<4x16x256xbf16>
    tpu.vector_store %arg10[%c0_34, %c0_35, %c0_36], %65 {strides = array<i32>} : memref<4x16x256xbf16, #tpu.memory_space<vmem>>, vector<4x16x256xbf16>,
    return
  }
  func.func @transform_0(%arg0: i32) -> (i32, i32, i32) {
    %c0_i32 = arith.constant 0 : i32
    %c0_i32_0 = arith.constant 0 : i32
    %c0_i32_1 = arith.constant 0 : i32
    return %arg0, %c0_i32, %c0_i32_0 : i32, i32, i32
  }
  func.func @transform_1(%arg0: i32) -> (i32, i32) {
    %c0_i32 = arith.constant 0 : i32
    %c0_i32_0 = arith.constant 0 : i32
    %c0_i32_1 = arith.constant 0 : i32
    return %c0_i32, %c0_i32_0 : i32, i32
  }
  func.func @transform_2(%arg0: i32) -> (i32, i32) {
    %c0_i32 = arith.constant 0 : i32
    %c0_i32_0 = arith.constant 0 : i32
    %c0_i32_1 = arith.constant 0 : i32
    return %c0_i32, %c0_i32_0 : i32, i32
  }
  func.func @transform_3(%arg0: i32) -> (i32, i32) {
    %c0_i32 = arith.constant 0 : i32
    %c0_i32_0 = arith.constant 0 : i32
    %c0_i32_1 = arith.constant 0 : i32
    return %c0_i32, %c0_i32_0 : i32, i32
  }
  func.func @transform_4(%arg0: i32) -> (i32, i32) {
    %c0_i32 = arith.constant 0 : i32
    %c0_i32_0 = arith.constant 0 : i32
    %c0_i32_1 = arith.constant 0 : i32
    return %c0_i32, %c0_i32_0 : i32, i32
  }
  func.func @transform_5(%arg0: i32) -> (i32, i32) {
    %c0_i32 = arith.constant 0 : i32
    %c0_i32_0 = arith.constant 0 : i32
    %c0_i32_1 = arith.constant 0 : i32
    return %c0_i32, %c0_i32_0 : i32, i32
  }
  func.func @transform_6(%arg0: i32) -> (i32, i32) {
    %c0_i32 = arith.constant 0 : i32
    %c0_i32_0 = arith.constant 0 : i32
    %c0_i32_1 = arith.constant 0 : i32
    return %c0_i32, %c0_i32_0 : i32, i32
  }
  func.func @transform_7(%arg0: i32) -> (i32, i32) {
    %c0_i32 = arith.constant 0 : i32
    %c0_i32_0 = arith.constant 0 : i32
    %c0_i32_1 = arith.constant 0 : i32
    return %c0_i32, %c0_i32_0 : i32, i32
  }
  func.func @transform_8(%arg0: i32) -> (i32, i32) {
    %c0_i32 = arith.constant 0 : i32
    %c0_i32_0 = arith.constant 0 : i32
    %c0_i32_1 = arith.constant 0 : i32
    return %c0_i32, %c0_i32_0 : i32, i32
  }
  func.func @transform_9(%arg0: i32) -> (i32, i32, i32) {
    %c0_i32 = arith.constant 0 : i32
    %c0_i32_0 = arith.constant 0 : i32
    %c0_i32_1 = arith.constant 0 : i32
    return %arg0, %c0_i32, %c0_i32_0 : i32, i32, i32
  }
}

</mosaic_0001>

<llo_original>
// kernel: tpu_custom_call.1
$region0: #{tpu_custom_call.1}
  #allocation0 [shape = 'u32[]', space=smem, size = 0x4, offset = 0x4, fixed_abs, tag = 'smem constant byte address 0x4 - core index']
  #allocation1 [shape = 'u32[144,128]{1,0:T(1,128)}', space=vmem, size = 0x12000, scoped, tag = 'internal scratch']
  %s0 = inlined_call_operand.vmem [shape: bf16[8,16,256], index: 0, kind: input, shape index: {}]
  %s1 = inlined_call_operand.vmem [shape: bf16[256,20], index: 1, kind: input, shape index: {}]
  %s2 = inlined_call_operand.vmem [shape: f32[16,256], index: 2, kind: input, shape index: {}]
  %s3 = inlined_call_operand.vmem [shape: f32[4,256], index: 3, kind: input, shape index: {}]
  %s4 = inlined_call_operand.vmem [shape: f32[16,4], index: 4, kind: input, shape index: {}]
  %s5 = inlined_call_operand.hbm [shape: f32[4,16], index: 5, kind: input, shape index: {}]
  %s6 = inlined_call_operand.hbm [shape: f32[4,16], index: 6, kind: input, shape index: {}]
  %s7 = inlined_call_operand.hbm [shape: f32[4,16], index: 7, kind: input, shape index: {}]
  %s8 = inlined_call_operand.vmem [shape: f32[16,1], index: 8, kind: input, shape index: {}]
  %s9 = inlined_call_operand.hbm [shape: bf16[8,16,256], index: 9, kind: output, shape index: {}]
  %s10 = sld [smem:[#allocation0]]
  $region81: #{tpu_custom_call.1} parent=0
    _
  %s12 = ssub.s32 1, %s10
  %s13 = scalar_select 0, %s12, %s10
  $region1: #{tpu_custom_call.1} parent=0
    #allocation2 [shape = 'u8[2048]{0}', space=vmem, size = 0x800, scoped, tag = 'input window, operand 5, single buffered']
    #allocation3 [shape = 's32[2]{0}', space=sflag, size = 0x8, scoped, tag = 'scoped memory for tpu_custom_call.1']
    #allocation4 [shape = 's32[2]{0}', space=sflag, size = 0x8, scoped, tag = 'scoped memory for tpu_custom_call.1']
    #allocation5 [shape = 'u8[2048]{0}', space=vmem, size = 0x800, scoped, tag = 'input window, operand 6, single buffered']
    #allocation6 [shape = 's32[1]{0}', space=sflag, size = 0x4, scoped, tag = 'scoped memory for tpu_custom_call.1']
    #allocation7 [shape = 'u8[2048]{0}', space=vmem, size = 0x800, scoped, tag = 'input window, operand 7, single buffered']
    #allocation8 [shape = 'u8[65536]{0}', space=vmem, size = 0x10000, scoped, tag = 'output window, operand 0']
    %14 = vsyncpa [#allocation3], 0
    %15 = vsyncpa [#allocation6], 0
    %16 = vsyncpa [#allocation4], 0
    %s17 = scalar_lea.sflag [#allocation4], 1
    %18 = vsyncpa %s17, 0
    loop: start=0, step=1, limit=4
    $region2: #{tpu_custom_call.1} parent=1 // loop_pre_header
      _
    $region3: #{tpu_custom_call.1} parent=1 // loop_header
      %s20 = sphi 0, %s24
      %p21 = scmp.ge.s32.totalorder %s20, 4
      %s30 = sphi 0, %s32
      %s33 = sphi 0, %s30
      %s34 = sphi 0, %s33
      %s50 = sphi 0, %s34
      %s54 = sphi 0, %s54
      %s56 = sphi 0, %s54
      %s57 = sphi 0, %s56
      %s71 = sphi 0, %s57
      %s75 = sphi 0, %s75
      %s77 = sphi 0, %s75
      %s78 = sphi 0, %s77
      %s92 = sphi 0, %s78
      %s96 = sphi 0, %s96
      %s98 = sphi 0, %s96
      %s99 = sphi 0, %s98
      %s113 = sphi 0, %s99
      %s117 = sphi 0, %s117
      %s119 = sphi 0, %s117
      %s120 = sphi 0, %s119
      %s134 = sphi 0, %s120
      %s138 = sphi 0, %s138
      %s140 = sphi 0, %s138
      %s141 = sphi 0, %s140
      %s155 = sphi 0, %s141
      %s159 = sphi 0, %s159
      %s161 = sphi 0, %s159
      %s162 = sphi 0, %s161
      %s176 = sphi 0, %s162
      %s180 = sphi 0, %s180
      %s182 = sphi 0, %s180
      %s183 = sphi 0, %s182
      %s197 = sphi 0, %s183
      %s201 = sphi 0, %s201
      %s203 = sphi 0, %s201
      %s204 = sphi 0, %s203
      %s218 = sphi 0, %s204
      %s224 = sphi 0, %s226
      %s227 = sphi 0, %s224
      %s228 = sphi 0, %s227
      %s244 = sphi 0, %s228
    $region4: #{tpu_custom_call.1} parent=1 // loop_header_branch
      %23 = sbr.rel (%p21) target = $region8
    $region5: #{tpu_custom_call.1} parent=1 // loop_body
      %s25 = ssub.s32 %s20, 1
      %s26 = ssub.s32 %s20, 2
      %s27 = sadd.s32 %s20, 1
      %s28 = ssub.s32 %s20, %s27
      %p29 = scmp.eq.s32.totalorder %s28, 0
      %s31 = sadd.s32 %s30, 1
      %s32 = scalar_select %p29, %s30, %s31
      %p35 = pneg %p29
      %p36 = scmp.eq.s32.totalorder %s20, 1
      %p37 = por %p35, %p36
      %p38 = scmp.ne.s32.totalorder %s30, %s33
      %p39 = scmp.eq.s32.totalorder %s20, 0
      %p40 = por %p38, %p39
      %p41 = scmp.ne.s32.totalorder %s30, %s33
      %p42 = scmp.eq.s32.totalorder %s25, 1
      %p43 = por %p41, %p42
      %p44 = scmp.ne.s32.totalorder %s33, %s34
      %p45 = scmp.eq.s32.totalorder %s25, 0
      %p46 = por %p44, %p45
      %p47 = scmp.ne.s32.totalorder %s33, %s34
      %p48 = scmp.eq.s32.totalorder %s26, 1
      %p49 = por %p47, %p48
      %p51 = scmp.ne.s32.totalorder %s34, %s50
      %p52 = scmp.eq.s32.totalorder %s26, 0
      %p53 = por %p51, %p52
      %s55 = sadd.s32 %s54, 1
      %p58 = scmp.eq.s32.totalorder %s20, 1
      %p59 = scmp.ne.s32.totalorder %s54, %s56
      %p60 = scmp.eq.s32.totalorder %s20, 0
      %p61 = por %p59, %p60
      %p62 = scmp.ne.s32.totalorder %s54, %s56
      %p63 = scmp.eq.s32.totalorder %s25, 1
      %p64 = por %p62, %p63
      %p65 = scmp.ne.s32.totalorder %s56, %s57
      %p66 = scmp.eq.s32.totalorder %s25, 0
      %p67 = por %p65, %p66
      %p68 = scmp.ne.s32.totalorder %s56, %s57
      %p69 = scmp.eq.s32.totalorder %s26, 1
      %p70 = por %p68, %p69
      %p72 = scmp.ne.s32.totalorder %s57, %s71
      %p73 = scmp.eq.s32.totalorder %s26, 0
      %p74 = por %p72, %p73
      %s76 = sadd.s32 %s75, 1
      %p79 = scmp.eq.s32.totalorder %s20, 1
      %p80 = scmp.ne.s32.totalorder %s75, %s77
      %p81 = scmp.eq.s32.totalorder %s20, 0
      %p82 = por %p80, %p81
      %p83 = scmp.ne.s32.totalorder %s75, %s77
      %p84 = scmp.eq.s32.totalorder %s25, 1
      %p85 = por %p83, %p84
      %p86 = scmp.ne.s32.totalorder %s77, %s78
      %p87 = scmp.eq.s32.totalorder %s25, 0
      %p88 = por %p86, %p87
      %p89 = scmp.ne.s32.totalorder %s77, %s78
      %p90 = scmp.eq.s32.totalorder %s26, 1
      %p91 = por %p89, %p90
      %p93 = scmp.ne.s32.totalorder %s78, %s92
      %p94 = scmp.eq.s32.totalorder %s26, 0
      %p95 = por %p93, %p94
      %s97 = sadd.s32 %s96, 1
      %p100 = scmp.eq.s32.totalorder %s20, 1
      %p101 = scmp.ne.s32.totalorder %s96, %s98
      %p102 = scmp.eq.s32.totalorder %s20, 0
      %p103 = por %p101, %p102
      %p104 = scmp.ne.s32.totalorder %s96, %s98
      %p105 = scmp.eq.s32.totalorder %s25, 1
      %p106 = por %p104, %p105
      %p107 = scmp.ne.s32.totalorder %s98, %s99
      %p108 = scmp.eq.s32.totalorder %s25, 0
      %p109 = por %p107, %p108
      %p110 = scmp.ne.s32.totalorder %s98, %s99
      %p111 = scmp.eq.s32.totalorder %s26, 1
      %p112 = por %p110, %p111
      %p114 = scmp.ne.s32.totalorder %s99, %s113
      %p115 = scmp.eq.s32.totalorder %s26, 0
      %p116 = por %p114, %p115
      %s118 = sadd.s32 %s117, 1
      %p121 = scmp.eq.s32.totalorder %s20, 1
      %p122 = scmp.ne.s32.totalorder %s117, %s119
      %p123 = scmp.eq.s32.totalorder %s20, 0
      %p124 = por %p122, %p123
      %p125 = scmp.ne.s32.totalorder %s117, %s119
      %p126 = scmp.eq.s32.totalorder %s25, 1
      %p127 = por %p125, %p126
      %p128 = scmp.ne.s32.totalorder %s119, %s120
      %p129 = scmp.eq.s32.totalorder %s25, 0
      %p130 = por %p128, %p129
      %p131 = scmp.ne.s32.totalorder %s119, %s120
      %p132 = scmp.eq.s32.totalorder %s26, 1
      %p133 = por %p131, %p132
      %p135 = scmp.ne.s32.totalorder %s120, %s134
      %p136 = scmp.eq.s32.totalorder %s26, 0
      %p137 = por %p135, %p136
      %s139 = sadd.s32 %s138, 1
      %p142 = scmp.eq.s32.totalorder %s20, 1
      %p143 = scmp.ne.s32.totalorder %s138, %s140
      %p144 = scmp.eq.s32.totalorder %s20, 0
      %p145 = por %p143, %p144
      %p146 = scmp.ne.s32.totalorder %s138, %s140
      %p147 = scmp.eq.s32.totalorder %s25, 1
      %p148 = por %p146, %p147
      %p149 = scmp.ne.s32.totalorder %s140, %s141
      %p150 = scmp.eq.s32.totalorder %s25, 0
      %p151 = por %p149, %p150
      %p152 = scmp.ne.s32.totalorder %s140, %s141
      %p153 = scmp.eq.s32.totalorder %s26, 1
      %p154 = por %p152, %p153
      %p156 = scmp.ne.s32.totalorder %s141, %s155
      %p157 = scmp.eq.s32.totalorder %s26, 0
      %p158 = por %p156, %p157
      %s160 = sadd.s32 %s159, 1
      %p163 = scmp.eq.s32.totalorder %s20, 1
      %p164 = scmp.ne.s32.totalorder %s159, %s161
      %p165 = scmp.eq.s32.totalorder %s20, 0
      %p166 = por %p164, %p165
      %p167 = scmp.ne.s32.totalorder %s159, %s161
      %p168 = scmp.eq.s32.totalorder %s25, 1
      %p169 = por %p167, %p168
      %p170 = scmp.ne.s32.totalorder %s161, %s162
      %p171 = scmp.eq.s32.totalorder %s25, 0
      %p172 = por %p170, %p171
      %p173 = scmp.ne.s32.totalorder %s161, %s162
      %p174 = scmp.eq.s32.totalorder %s26, 1
      %p175 = por %p173, %p174
      %p177 = scmp.ne.s32.totalorder %s162, %s176
      %p178 = scmp.eq.s32.totalorder %s26, 0
      %p179 = por %p177, %p178
      %s181 = sadd.s32 %s180, 1
      %p184 = scmp.eq.s32.totalorder %s20, 1
      %p185 = scmp.ne.s32.totalorder %s180, %s182
      %p186 = scmp.eq.s32.totalorder %s20, 0
      %p187 = por %p185, %p186
      %p188 = scmp.ne.s32.totalorder %s180, %s182
      %p189 = scmp.eq.s32.totalorder %s25, 1
      %p190 = por %p188, %p189
      %p191 = scmp.ne.s32.totalorder %s182, %s183
      %p192 = scmp.eq.s32.totalorder %s25, 0
      %p193 = por %p191, %p192
      %p194 = scmp.ne.s32.totalorder %s182, %s183
      %p195 = scmp.eq.s32.totalorder %s26, 1
      %p196 = por %p194, %p195
      %p198 = scmp.ne.s32.totalorder %s183, %s197
      %p199 = scmp.eq.s32.totalorder %s26, 0
      %p200 = por %p198, %p199
      %s202 = sadd.s32 %s201, 1
      %p205 = scmp.eq.s32.totalorder %s20, 1
      %p206 = scmp.ne.s32.totalorder %s201, %s203
      %p207 = scmp.eq.s32.totalorder %s20, 0
      %p208 = por %p206, %p207
      %p209 = scmp.ne.s32.totalorder %s201, %s203
      %p210 = scmp.eq.s32.totalorder %s25, 1
      %p211 = por %p209, %p210
      %p212 = scmp.ne.s32.totalorder %s203, %s204
      %p213 = scmp.eq.s32.totalorder %s25, 0
      %p214 = por %p212, %p213
      %p215 = scmp.ne.s32.totalorder %s203, %s204
      %p216 = scmp.eq.s32.totalorder %s26, 1
      %p217 = por %p215, %p216
      %p219 = scmp.ne.s32.totalorder %s204, %s218
      %p220 = scmp.eq.s32.totalorder %s26, 0
      %p221 = por %p219, %p220
      %s222 = ssub.s32 %s20, %s27
      %p223 = scmp.eq.s32.totalorder %s222, 0
      %s225 = sadd.s32 %s224, 1
      %s226 = scalar_select %p223, %s224, %s225
      %p229 = pneg %p223
      %p230 = scmp.eq.s32.totalorder %s20, 1
      %p231 = por %p229, %p230
      %p232 = scmp.ne.s32.totalorder %s224, %s227
      %p233 = scmp.eq.s32.totalorder %s20, 0
      %p234 = por %p232, %p233
      %p235 = scmp.ne.s32.totalorder %s224, %s227
      %p236 = scmp.eq.s32.totalorder %s25, 1
      %p237 = por %p235, %p236
      %p238 = scmp.ne.s32.totalorder %s227, %s228
      %p239 = scmp.eq.s32.totalorder %s25, 0
      %p240 = por %p238, %p239
      %p241 = scmp.ne.s32.totalorder %s227, %s228
      %p242 = scmp.eq.s32.totalorder %s26, 1
      %p243 = por %p241, %p242
      %p245 = scmp.ne.s32.totalorder %s228, %s244
      %p246 = scmp.eq.s32.totalorder %s26, 0
      %p247 = por %p245, %p246
      %p248 = scmp.le.s32.totalorder 1, %s20
      %p249 = scmp.lt.s32.totalorder %s20, 3
      %p250 = pnand %p248, %p249
      %p251 = pneg %p250
      // Predicated region
      $region9: #{tpu_custom_call.1} parent=5 // pred_check
        _
      $region10: #{tpu_custom_call.1} parent=5 // pred_check_branch
        %253 = sbr.rel (%p250) target = $region12
      $region11: #{tpu_custom_call.1} parent=5 // pred_region
        %s254 = ssub.s32 %s20, 1
        // Predicated region
        $region13: #{tpu_custom_call.1} parent=11 // pred_check
          %p255 = pneg %p67
        $region14: #{tpu_custom_call.1} parent=11 // pred_check_branch
          %257 = sbr.rel (%p255) target = $region16
        $region15: #{tpu_custom_call.1} parent=11 // pred_region
          _
        $region16: #{tpu_custom_call.1} parent=11 // pred_fallthru
          _
        // Predicated region
        $region17: #{tpu_custom_call.1} parent=11 // pred_check
          %p258 = pneg %p88
        $region18: #{tpu_custom_call.1} parent=11 // pred_check_branch
          %260 = sbr.rel (%p258) target = $region20
        $region19: #{tpu_custom_call.1} parent=11 // pred_region
          _
        $region20: #{tpu_custom_call.1} parent=11 // pred_fallthru
          _
        // Predicated region
        $region21: #{tpu_custom_call.1} parent=11 // pred_check
          %p261 = pneg %p109
        $region22: #{tpu_custom_call.1} parent=11 // pred_check_branch
          %263 = sbr.rel (%p261) target = $region24
        $region23: #{tpu_custom_call.1} parent=11 // pred_region
          _
        $region24: #{tpu_custom_call.1} parent=11 // pred_fallthru
          _
        // Predicated region
        $region25: #{tpu_custom_call.1} parent=11 // pred_check
          %p264 = pneg %p130
        $region26: #{tpu_custom_call.1} parent=11 // pred_check_branch
          %266 = sbr.rel (%p264) target = $region28
        $region27: #{tpu_custom_call.1} parent=11 // pred_region
          _
        $region28: #{tpu_custom_call.1} parent=11 // pred_fallthru
          _
        // Predicated region
        $region29: #{tpu_custom_call.1} parent=11 // pred_check
          %p267 = pneg %p151
        $region30: #{tpu_custom_call.1} parent=11 // pred_check_branch
          %269 = sbr.rel (%p267) target = $region32
        $region31: #{tpu_custom_call.1} parent=11 // pred_region
          %s271 = ssub.s32 64, 64
          %272 = vsyncadd [#allocation3], %s271
          %s274 = sshll.u32 [#allocation2], 4
          %s275 = int_to_ptr.vmem [resolvable:$true] %s274
          %277 = dma.hbm_to_vmem [thread:$0]  %s5, 64, %s275, [#allocation3]
        $region32: #{tpu_custom_call.1} parent=11 // pred_fallthru
          _
        // Predicated region
        $region33: #{tpu_custom_call.1} parent=11 // pred_check
          %p278 = pneg %p172
        $region34: #{tpu_custom_call.1} parent=11 // pred_check_branch
          %280 = sbr.rel (%p278) target = $region36
        $region35: #{tpu_custom_call.1} parent=11 // pred_region
          %s282 = ssub.s32 64, 64
          %283 = vsyncadd [#allocation6], %s282
          %s285 = sshll.u32 [#allocation5], 4
          %s286 = int_to_ptr.vmem [resolvable:$true] %s285
          %288 = dma.hbm_to_vmem [thread:$0]  %s6, 64, %s286, [#allocation6]
        $region36: #{tpu_custom_call.1} parent=11 // pred_fallthru
          _
        // Predicated region
        $region37: #{tpu_custom_call.1} parent=11 // pred_check
          %p289 = pneg %p193
        $region38: #{tpu_custom_call.1} parent=11 // pred_check_branch
          %291 = sbr.rel (%p289) target = $region40
        $region39: #{tpu_custom_call.1} parent=11 // pred_region
          %s293 = ssub.s32 64, 64
          %294 = vsyncadd [#allocation6], %s293
          %s296 = sshll.u32 [#allocation7], 4
          %s297 = int_to_ptr.vmem [resolvable:$true] %s296
          %299 = dma.hbm_to_vmem [thread:$0]  %s7, 64, %s297, [#allocation6]
        $region40: #{tpu_custom_call.1} parent=11 // pred_fallthru
          _
        // Predicated region
        $region41: #{tpu_custom_call.1} parent=11 // pred_check
          %p300 = pneg %p214
        $region42: #{tpu_custom_call.1} parent=11 // pred_check_branch
          %302 = sbr.rel (%p300) target = $region44
        $region43: #{tpu_custom_call.1} parent=11 // pred_region
          _
        $region44: #{tpu_custom_call.1} parent=11 // pred_fallthru
          _
      $region12: #{tpu_custom_call.1} parent=5 // pred_fallthru
        _
      %p303 = scmp.lt.s32.totalorder %s20, 2
      // Predicated region
      $region45: #{tpu_custom_call.1} parent=5 // pred_check
        %p304 = pneg %p303
      $region46: #{tpu_custom_call.1} parent=5 // pred_check_branch
        %306 = sbr.rel (%p304) target = $region48
      $region47: #{tpu_custom_call.1} parent=5 // pred_region
        // Predicated region
        $region49: #{tpu_custom_call.1} parent=47 // pred_check
          %p307 = pneg %p40
        $region50: #{tpu_custom_call.1} parent=47 // pred_check_branch
          %309 = sbr.rel (%p307) target = $region52
        $region51: #{tpu_custom_call.1} parent=47 // pred_region
          %s310 = smul.u32 4, %s20
          %p311 = scmp.lt.s32.totalorder %s310, 7
          %s312 = scalar_select %p311, %s310, 7
          %s313 = smul.addr %s312, 4
          %s314 = smul.addr %s313, 4
          %s315 = scalar_lea.vmem %s0, %s314
          %s316 = smul.u32 4, %s20
        $region52: #{tpu_custom_call.1} parent=47 // pred_fallthru
          _
      $region48: #{tpu_custom_call.1} parent=5 // pred_fallthru
        _
      %p317 = scmp.le.s32.totalorder 1, %s20
      %p318 = scmp.lt.s32.totalorder %s20, 3
      %p319 = pnand %p317, %p318
      %p320 = pneg %p319
      // Predicated region
      $region53: #{tpu_custom_call.1} parent=5 // pred_check
        _
      $region54: #{tpu_custom_call.1} parent=5 // pred_check_branch
        %322 = sbr.rel (%p319) target = $region56
      $region55: #{tpu_custom_call.1} parent=5 // pred_region
        %s323 = ssub.s32 %s20, 1
        // Predicated region
        $region57: #{tpu_custom_call.1} parent=55 // pred_check
          %p324 = pneg %p151
        $region58: #{tpu_custom_call.1} parent=55 // pred_check_branch
          %326 = sbr.rel (%p324) target = $region60
        $region59: #{tpu_custom_call.1} parent=55 // pred_region
          %327 = dma.done [#allocation3], 64
        $region60: #{tpu_custom_call.1} parent=55 // pred_fallthru
          _
        // Predicated region
        $region61: #{tpu_custom_call.1} parent=55 // pred_check
          %p328 = pneg %p172
        $region62: #{tpu_custom_call.1} parent=55 // pred_check_branch
          %330 = sbr.rel (%p328) target = $region64
        $region63: #{tpu_custom_call.1} parent=55 // pred_region
          %331 = dma.done [#allocation6], 64
        $region64: #{tpu_custom_call.1} parent=55 // pred_fallthru
          _
        // Predicated region
        $region65: #{tpu_custom_call.1} parent=55 // pred_check
          %p332 = pneg %p193
        $region66: #{tpu_custom_call.1} parent=55 // pred_check_branch
          %334 = sbr.rel (%p332) target = $region68
        $region67: #{tpu_custom_call.1} parent=55 // pred_region
          %335 = dma.done [#allocation6], 64
        $region68: #{tpu_custom_call.1} parent=55 // pred_fallthru
          _
        %s336 = smul.u32 4, %s25
        %p337 = scmp.lt.s32.totalorder %s336, 7
        %s338 = scalar_select %p337, %s336, 7
        %s339 = smul.addr %s338, 4
        %s340 = smul.addr %s339, 4
        %s341 = scalar_lea.vmem %s0, %s340
        %p342 = pneg %p46
        %p343 = pneg %p43
        %p344 = pneg %p67
        %p345 = pneg %p64
        %p346 = pneg %p88
        %p347 = pneg %p85
        %p348 = pneg %p109
        %p349 = pneg %p106
        %p350 = pneg %p130
        %p351 = pneg %p127
        %p352 = pneg %p151
        %p353 = pneg %p148
        %p354 = pneg %p172
        %p355 = pneg %p169
        %p356 = pneg %p193
        %p357 = pneg %p190
        %p358 = pneg %p214
        %p359 = pneg %p211
        %p360 = pneg %p240
        %p361 = pneg %p237
        %s362 = sand.u32 %s227, 1
        %s363 = scalar_lea.sflag [#allocation4], %s362
        %s364 = sand.u32 %s227, 1
        %s365 = smul.addr %s364, 64
        %s366 = scalar_lea.vmem [#allocation8], %s365
        %s367 = smul.u32 4, %s25
        %p368 = scmp.lt.s32.totalorder %s367, 7
        %s369 = scalar_select %p368, %s367, 7
        %s370 = smul.addr %s369, 4
        %s371 = smul.addr %s370, 4
        %s372 = scalar_lea.vmem %s0, %s371
        %s373 = smul.u32 4, %s25
        %s374 = smul.u32 4, %s25
        %v376 = vld [vmem:[%s372] sm:$0xff]
        %v377 = vld [vmem:[%s372 + $0x8] sm:$0xff]
        %v378 = vld [vmem:[%s372 + $0x10] sm:$0xff]
        %v379 = vld [vmem:[%s372 + $0x18] sm:$0xff]
        %v380 = vld [vmem:[%s372 + $0x20] sm:$0xff]
        %v381 = vld [vmem:[%s372 + $0x28] sm:$0xff]
        %v382 = vld [vmem:[%s372 + $0x30] sm:$0xff]
        %v383 = vld [vmem:[%s372 + $0x38] sm:$0xff]
        %v384 = vunpack.c.l.bf16 %v376
        %v385 = vunpack.c.h.bf16 %v376
        %v386 = vunpack.c.l.bf16 %v377
        %v387 = vunpack.c.h.bf16 %v377
        %v388 = vunpack.c.l.bf16 %v378
        %v389 = vunpack.c.h.bf16 %v378
        %v390 = vunpack.c.l.bf16 %v379
        %v391 = vunpack.c.h.bf16 %v379
        %v392 = vunpack.c.l.bf16 %v380
        %v393 = vunpack.c.h.bf16 %v380
        %v394 = vunpack.c.l.bf16 %v381
        %v395 = vunpack.c.h.bf16 %v381
        %v396 = vunpack.c.l.bf16 %v382
        %v397 = vunpack.c.h.bf16 %v382
        %v398 = vunpack.c.l.bf16 %v383
        %v399 = vunpack.c.h.bf16 %v383
        %v400 = vld [vmem:[#allocation7] sm:$0x1]
        %v401 = vld [vmem:[#allocation7 + $0x1] sm:$0x1]
        %v402 = vld [vmem:[#allocation7 + $0x2] sm:$0x1]
        %v403 = vld [vmem:[#allocation7 + $0x3] sm:$0x1]
        %v404 = vld [vmem:[%s1] sm:$0xf]
        %v405 = vld [vmem:[%s1 + $0x4] sm:$0xf]
        %v406 = vld [vmem:[%s1 + $0x8] sm:$0xf]
        %v407 = vld [vmem:[%s1 + $0xc] sm:$0xf]
        %v408 = vld [vmem:[%s1 + $0x10] sm:$0xf]
        %v409 = vld [vmem:[%s1 + $0x14] sm:$0xf]
        %v410 = vld [vmem:[%s1 + $0x18] sm:$0xf]
        %v411 = vld [vmem:[%s1 + $0x1c] sm:$0xf]
        %v412 = vld [vmem:[%s1 + $0x20] sm:$0xf]
        %v413 = vld [vmem:[%s1 + $0x24] sm:$0xf]
        %v414 = vld [vmem:[%s1 + $0x28] sm:$0xf]
        %v415 = vld [vmem:[%s1 + $0x2c] sm:$0xf]
        %v416 = vld [vmem:[%s1 + $0x30] sm:$0xf]
        %v417 = vld [vmem:[%s1 + $0x34] sm:$0xf]
        %v418 = vld [vmem:[%s1 + $0x38] sm:$0xf]
        %v419 = vld [vmem:[%s1 + $0x3c] sm:$0xf]
        %v420 = vld [vmem:[%s1 + $0x40] sm:$0xf]
        %v421 = vld [vmem:[%s1 + $0x44] sm:$0xf]
        %v422 = vld [vmem:[%s1 + $0x48] sm:$0xf]
        %v423 = vld [vmem:[%s1 + $0x4c] sm:$0xf]
        %v424 = vld [vmem:[%s1 + $0x50] sm:$0xf]
        %v425 = vld [vmem:[%s1 + $0x54] sm:$0xf]
        %v426 = vld [vmem:[%s1 + $0x58] sm:$0xf]
        %v427 = vld [vmem:[%s1 + $0x5c] sm:$0xf]
        %v428 = vld [vmem:[%s1 + $0x60] sm:$0xf]
        %v429 = vld [vmem:[%s1 + $0x64] sm:$0xf]
        %v430 = vld [vmem:[%s1 + $0x68] sm:$0xf]
        %v431 = vld [vmem:[%s1 + $0x6c] sm:$0xf]
        %v432 = vld [vmem:[%s1 + $0x70] sm:$0xf]
        %v433 = vld [vmem:[%s1 + $0x74] sm:$0xf]
        %v434 = vld [vmem:[%s1 + $0x78] sm:$0xf]
        %v435 = vld [vmem:[%s1 + $0x7c] sm:$0xf]
        %v444 = vunpack.c.l.b16 %v376
        %v445 = vunpack.c.h.b16 %v376
        %v446 = vunpack.c.l.b16 %v377
        %v447 = vunpack.c.h.b16 %v377
        %v448 = vunpack.c.l.b16 %v378
        %v449 = vunpack.c.h.b16 %v378
        %v450 = vunpack.c.l.b16 %v379
        %v451 = vunpack.c.h.b16 %v379
        %v452 = vunpack.c.l.b16 %v380
        %v453 = vunpack.c.h.b16 %v380
        %v454 = vunpack.c.l.b16 %v381
        %v455 = vunpack.c.h.b16 %v381
        %v456 = vunpack.c.l.b16 %v382
        %v457 = vunpack.c.h.b16 %v382
        %v458 = vunpack.c.l.b16 %v383
        %v459 = vunpack.c.h.b16 %v383
        %v460 = vpack.c.b16 %v446, %v444
        %v461 = vpack.c.b16 %v447, %v445
        %v462 = vpack.c.b16 %v450, %v448
        %v463 = vpack.c.b16 %v451, %v449
        %v464 = vpack.c.b16 %v454, %v452
        %v465 = vpack.c.b16 %v455, %v453
        %v466 = vpack.c.b16 %v458, %v456
        %v467 = vpack.c.b16 %v459, %v457
        %v508 = vunpack.c.l.b16 %v404
        %v509 = vunpack.c.l.b16 %v405
        %v510 = vunpack.c.l.b16 %v406
        %v511 = vunpack.c.l.b16 %v407
        %v512 = vunpack.c.l.b16 %v408
        %v513 = vunpack.c.l.b16 %v409
        %v514 = vunpack.c.l.b16 %v410
        %v515 = vunpack.c.l.b16 %v411
        %v516 = vunpack.c.l.b16 %v412
        %v517 = vunpack.c.l.b16 %v413
        %v518 = vunpack.c.l.b16 %v414
        %v519 = vunpack.c.l.b16 %v415
        %v520 = vunpack.c.l.b16 %v416
        %v521 = vunpack.c.l.b16 %v417
        %v522 = vunpack.c.l.b16 %v418
        %v523 = vunpack.c.l.b16 %v419
        %v524 = vunpack.c.l.b16 %v420
        %v525 = vunpack.c.l.b16 %v421
        %v526 = vunpack.c.l.b16 %v422
        %v527 = vunpack.c.l.b16 %v423
        %v528 = vunpack.c.l.b16 %v424
        %v529 = vunpack.c.l.b16 %v425
        %v530 = vunpack.c.l.b16 %v426
        %v531 = vunpack.c.l.b16 %v427
        %v532 = vunpack.c.l.b16 %v428
        %v533 = vunpack.c.l.b16 %v429
        %v534 = vunpack.c.l.b16 %v430
        %v535 = vunpack.c.l.b16 %v431
        %v536 = vunpack.c.l.b16 %v432
        %v537 = vunpack.c.l.b16 %v433
        %v538 = vunpack.c.l.b16 %v434
        %v539 = vunpack.c.l.b16 %v435
        %v540 = vpack.c.b16 %v509, %v508
        %v541 = vpack.c.b16 %v511, %v510
        %v542 = vpack.c.b16 %v513, %v512
        %v543 = vpack.c.b16 %v515, %v514
        %v544 = vpack.c.b16 %v517, %v516
        %v545 = vpack.c.b16 %v519, %v518
        %v546 = vpack.c.b16 %v521, %v520
        %v547 = vpack.c.b16 %v523, %v522
        %v548 = vpack.c.b16 %v525, %v524
        %v549 = vpack.c.b16 %v527, %v526
        %v550 = vpack.c.b16 %v529, %v528
        %v551 = vpack.c.b16 %v531, %v530
        %v552 = vpack.c.b16 %v533, %v532
        %v553 = vpack.c.b16 %v535, %v534
        %v554 = vpack.c.b16 %v537, %v536
        %v555 = vpack.c.b16 %v539, %v538
        %572 = vmatprep.subr.bf16.mxu0 0
        %573 = vmatpush1.bf16.msra.mxu0 %v547
        %574 = vmatprep.subr.bf16.mxu0 0
        %575 = vmatpush1.bf16.msra.mxu0 %v546
        %576 = vmatprep.subr.bf16.mxu0 0
        %577 = vmatpush1.bf16.msra.mxu0 %v545
        %578 = vmatprep.subr.bf16.mxu0 0
        %579 = vmatpush1.bf16.msra.mxu0 %v544
        %580 = vmatprep.subr.bf16.mxu0 0
        %581 = vmatpush1.bf16.msra.mxu0 %v543
        %582 = vmatprep.subr.bf16.mxu0 0
        %583 = vmatpush1.bf16.msra.mxu0 %v542
        %584 = vmatprep.subr.bf16.mxu0 0
        %585 = vmatpush1.bf16.msra.mxu0 %v541
        %586 = vmatprep.subr.bf16.mxu0 0
        %587 = vmatpush1.bf16.msra.mxu0 %v540
        %588 = vmatprep.subr.bf16.mxu0 0
        %589 = vmatpush2.bf16.msra.mxu0 %v555
        %590 = vmatprep.subr.bf16.mxu0 0
        %591 = vmatpush2.bf16.msra.mxu0 %v554
        %592 = vmatprep.subr.bf16.mxu0 0
        %593 = vmatpush2.bf16.msra.mxu0 %v553
        %594 = vmatprep.subr.bf16.mxu0 0
        %595 = vmatpush2.bf16.msra.mxu0 %v552
        %596 = vmatprep.subr.bf16.mxu0 0
        %597 = vmatpush2.bf16.msra.mxu0 %v551
        %598 = vmatprep.subr.bf16.mxu0 0
        %599 = vmatpush2.bf16.msra.mxu0 %v550
        %600 = vmatprep.subr.bf16.mxu0 0
        %601 = vmatpush2.bf16.msra.mxu0 %v549
        %602 = vmatprep.subr.bf16.mxu0 0
        %603 = vmatpush2.bf16.msra.mxu0 %v548
        %604 = vmatprep.mubr.bf16.mxu0 %v461
        %605 = vmatmul.mubr.bf16.gmra.mxu0 %v460
        %v606 = vpop.f32.mrf.mxu0
        %v607 = vadd.f32 0.0, %v606
        %v608 = vpop.f32.mrf.mxu0
        %v609 = vpop.f32.mrf.mxu0
        %v610 = vadd.f32 0.0, %v609
        %v611 = vpop.f32.mrf.mxu0
        %612 = vmatprep.mubr.bf16.mxu0 %v463
        %613 = vmatmul.mubr.bf16.gmra.mxu0 %v462
        %v614 = vpop.f32.mrf.mxu0
        %v615 = vadd.f32 0.0, %v614
        %v616 = vpop.f32.mrf.mxu0
        %v617 = vpop.f32.mrf.mxu0
        %v618 = vadd.f32 0.0, %v617
        %v619 = vpop.f32.mrf.mxu0
        %620 = vmatprep.mubr.bf16.mxu0 %v465
        %621 = vmatmul.mubr.bf16.gmra.mxu0 %v464
        %v622 = vpop.f32.mrf.mxu0
        %v623 = vadd.f32 0.0, %v622
        %v624 = vpop.f32.mrf.mxu0
        %v625 = vpop.f32.mrf.mxu0
        %v626 = vadd.f32 0.0, %v625
        %v627 = vpop.f32.mrf.mxu0
        %628 = vmatprep.mubr.bf16.mxu0 %v467
        %629 = vmatmul.mubr.bf16.gmra.mxu0 %v466
        %v630 = vpop.f32.mrf.mxu0
        %v631 = vadd.f32 0.0, %v630
        %v632 = vpop.f32.mrf.mxu0
        %v633 = vpop.f32.mrf.mxu0
        %v634 = vadd.f32 0.0, %v633
        %v635 = vpop.f32.mrf.mxu0
        %636 = vdwg.mxu0
        %v637 = vld [vmem:[%s4] sm:$0xff]
        %v638 = vld [vmem:[%s4 + $0x8] sm:$0xff]
        %v639 = vlaneseq
        %v640 = vshrl.u32 %v639, 7
        %v641 = vsub.s32 0, %v640
        %v642 = vrot.slane %v400, %v641
        %643 = vxpose.xlu0.b32.start [1/16] %v607, 128
        %644 = vxpose.xlu0.b32.cont [2/16] %v610, 128
        %645 = vxpose.xlu0.b32.cont [3/16] 0.0, 128
        %646 = vxpose.xlu0.b32.cont [4/16] 0.0, 128
        %647 = vxpose.xlu0.b32.cont [5/16] 0.0, 128
        %648 = vxpose.xlu0.b32.cont [6/16] 0.0, 128
        %649 = vxpose.xlu0.b32.cont [7/16] 0.0, 128
        %650 = vxpose.xlu0.b32.cont [8/16] 0.0, 128
        %651 = vxpose.xlu0.b32.cont [9/16] 0.0, 128
        %652 = vxpose.xlu0.b32.cont [10/16] 0.0, 128
        %653 = vxpose.xlu0.b32.cont [11/16] 0.0, 128
        %654 = vxpose.xlu0.b32.cont [12/16] 0.0, 128
        %655 = vxpose.xlu0.b32.cont [13/16] 0.0, 128
        %656 = vxpose.xlu0.b32.cont [14/16] 0.0, 128
        %657 = vxpose.xlu0.b32.cont [15/16] 0.0, 128
        %658 = vxpose.xlu0.b32.end [16/16] 0.0, 128
        %v659 = vpop.trf.xlu0
        %v660 = vpop.trf.xlu0
        %v661 = vpop.trf.xlu0
        %v662 = vpop.trf.xlu0
        %v663 = vpop.trf.xlu0
        %v664 = vpop.trf.xlu0
        %v665 = vpop.trf.xlu0
        %v666 = vpop.trf.xlu0
        %v667 = vpop.trf.xlu0
        %v668 = vpop.trf.xlu0
        %v669 = vpop.trf.xlu0
        %v670 = vpop.trf.xlu0
        %v671 = vpop.trf.xlu0
        %v672 = vpop.trf.xlu0
        %v673 = vpop.trf.xlu0
        %v674 = vpop.trf.xlu0
        %675 = vxpose.xlu0.b32.start [1/16] %v615, 128
        %676 = vxpose.xlu0.b32.cont [2/16] %v618, 128
        %677 = vxpose.xlu0.b32.cont [3/16] 0.0, 128
        %678 = vxpose.xlu0.b32.cont [4/16] 0.0, 128
        %679 = vxpose.xlu0.b32.cont [5/16] 0.0, 128
        %680 = vxpose.xlu0.b32.cont [6/16] 0.0, 128
        %681 = vxpose.xlu0.b32.cont [7/16] 0.0, 128
        %682 = vxpose.xlu0.b32.cont [8/16] 0.0, 128
        %683 = vxpose.xlu0.b32.cont [9/16] 0.0, 128
        %684 = vxpose.xlu0.b32.cont [10/16] 0.0, 128
        %685 = vxpose.xlu0.b32.cont [11/16] 0.0, 128
        %686 = vxpose.xlu0.b32.cont [12/16] 0.0, 128
        %687 = vxpose.xlu0.b32.cont [13/16] 0.0, 128
        %688 = vxpose.xlu0.b32.cont [14/16] 0.0, 128
        %689 = vxpose.xlu0.b32.cont [15/16] 0.0, 128
        %690 = vxpose.xlu0.b32.end [16/16] 0.0, 128
        %v691 = vpop.trf.xlu0
        %v692 = vpop.trf.xlu0
        %v693 = vpop.trf.xlu0
        %v694 = vpop.trf.xlu0
        %v695 = vpop.trf.xlu0
        %v696 = vpop.trf.xlu0
        %v697 = vpop.trf.xlu0
        %v698 = vpop.trf.xlu0
        %v699 = vpop.trf.xlu0
        %v700 = vpop.trf.xlu0
        %v701 = vpop.trf.xlu0
        %v702 = vpop.trf.xlu0
        %v703 = vpop.trf.xlu0
        %v704 = vpop.trf.xlu0
        %v705 = vpop.trf.xlu0
        %v706 = vpop.trf.xlu0
        %707 = vxpose.xlu0.b32.start [1/16] %v623, 128
        %708 = vxpose.xlu0.b32.cont [2/16] %v626, 128
        %709 = vxpose.xlu0.b32.cont [3/16] 0.0, 128
        %710 = vxpose.xlu0.b32.cont [4/16] 0.0, 128
        %711 = vxpose.xlu0.b32.cont [5/16] 0.0, 128
        %712 = vxpose.xlu0.b32.cont [6/16] 0.0, 128
        %713 = vxpose.xlu0.b32.cont [7/16] 0.0, 128
        %714 = vxpose.xlu0.b32.cont [8/16] 0.0, 128
        %715 = vxpose.xlu0.b32.cont [9/16] 0.0, 128
        %716 = vxpose.xlu0.b32.cont [10/16] 0.0, 128
        %717 = vxpose.xlu0.b32.cont [11/16] 0.0, 128
        %718 = vxpose.xlu0.b32.cont [12/16] 0.0, 128
        %719 = vxpose.xlu0.b32.cont [13/16] 0.0, 128
        %720 = vxpose.xlu0.b32.cont [14/16] 0.0, 128
        %721 = vxpose.xlu0.b32.cont [15/16] 0.0, 128
        %722 = vxpose.xlu0.b32.end [16/16] 0.0, 128
        %v723 = vpop.trf.xlu0
        %v724 = vpop.trf.xlu0
        %v725 = vpop.trf.xlu0
        %v726 = vpop.trf.xlu0
        %v727 = vpop.trf.xlu0
        %v728 = vpop.trf.xlu0
        %v729 = vpop.trf.xlu0
        %v730 = vpop.trf.xlu0
        %v731 = vpop.trf.xlu0
        %v732 = vpop.trf.xlu0
        %v733 = vpop.trf.xlu0
        %v734 = vpop.trf.xlu0
        %v735 = vpop.trf.xlu0
        %v736 = vpop.trf.xlu0
        %v737 = vpop.trf.xlu0
        %v738 = vpop.trf.xlu0
        %739 = vxpose.xlu0.b32.start [1/16] %v631, 128
        %740 = vxpose.xlu0.b32.cont [2/16] %v634, 128
        %741 = vxpose.xlu0.b32.cont [3/16] 0.0, 128
        %742 = vxpose.xlu0.b32.cont [4/16] 0.0, 128
        %743 = vxpose.xlu0.b32.cont [5/16] 0.0, 128
        %744 = vxpose.xlu0.b32.cont [6/16] 0.0, 128
        %745 = vxpose.xlu0.b32.cont [7/16] 0.0, 128
        %746 = vxpose.xlu0.b32.cont [8/16] 0.0, 128
        %747 = vxpose.xlu0.b32.cont [9/16] 0.0, 128
        %748 = vxpose.xlu0.b32.cont [10/16] 0.0, 128
        %749 = vxpose.xlu0.b32.cont [11/16] 0.0, 128
        %750 = vxpose.xlu0.b32.cont [12/16] 0.0, 128
        %751 = vxpose.xlu0.b32.cont [13/16] 0.0, 128
        %752 = vxpose.xlu0.b32.cont [14/16] 0.0, 128
        %753 = vxpose.xlu0.b32.cont [15/16] 0.0, 128
        %754 = vxpose.xlu0.b32.end [16/16] 0.0, 128
        %v755 = vpop.trf.xlu0
        %v756 = vpop.trf.xlu0
        %v757 = vpop.trf.xlu0
        %v758 = vpop.trf.xlu0
        %v759 = vpop.trf.xlu0
        %v760 = vpop.trf.xlu0
        %v761 = vpop.trf.xlu0
        %v762 = vpop.trf.xlu0
        %v763 = vpop.trf.xlu0
        %v764 = vpop.trf.xlu0
        %v765 = vpop.trf.xlu0
        %v766 = vpop.trf.xlu0
        %v767 = vpop.trf.xlu0
        %v768 = vpop.trf.xlu0
        %v769 = vpop.trf.xlu0
        %v770 = vpop.trf.xlu0
        %v783 = vcombine.high %v659, %v659
        %v784 = vcombine.high %v660, %v660
        %v785 = vcombine.high %v691, %v691
        %v786 = vcombine.high %v692, %v692
        %v787 = vcombine.high %v723, %v723
        %v788 = vcombine.high %v724, %v724
        %v789 = vcombine.high %v755, %v755
        %v790 = vcombine.high %v756, %v756
        %v792 = vcombine.high %v642, %v642
        %v793 = vcombine.low %v659, %v783
        %v794 = vcombine.low %v660, %v784
        %v795 = vcombine.low %v661, %v691
        %v796 = vcombine.low %v785, %v692
        %v797 = vcombine.low %v786, %v693
        %v798 = vcombine.low %v723, %v787
        %v799 = vcombine.low %v724, %v788
        %v800 = vcombine.low %v725, %v755
        %v801 = vcombine.low %v789, %v756
        %v802 = vcombine.low %v790, %v757
        %v803 = vcombine.low %v642, %v792
        %v804 = vcombine.low %v642, %v642
        %v805 = vcombine.low %v792, %v642
        %vm809 = vcmask 130048
        %v810 = vsel %vm809, %v793, 0
        %v812 = vsel %vm809, %v794, 0
        %v814 = vsel %vm809, %v795, 0
        %v816 = vsel %vm809, %v796, 0
        %v818 = vsel %vm809, %v797, 0
        %v820 = vsel %vm809, %v798, 0
        %v822 = vsel %vm809, %v799, 0
        %v824 = vsel %vm809, %v800, 0
        %v826 = vsel %vm809, %v801, 0
        %v828 = vsel %vm809, %v802, 0
        %830 = vmatprep.subr.mxu0 0.0
        %831 = vmatpush1.msra.mxu0 0.0
        %832 = vmatprep.subr.mxu0 0.0
        %833 = vmatpush1.msra.mxu0 0.0
        %834 = vmatprep.subr.mxu0 0.0
        %835 = vmatpush1.msra.mxu0 0.0
        %836 = vmatprep.subr.mxu0 0.0
        %837 = vmatpush1.msra.mxu0 0.0
        %838 = vmatprep.subr.mxu0 0.0
        %839 = vmatpush1.msra.mxu0 0.0
        %840 = vmatprep.subr.mxu0 0.0
        %841 = vmatpush1.msra.mxu0 0.0
        %842 = vmatprep.subr.mxu0 0.0
        %843 = vmatpush1.msra.mxu0 0.0
        %844 = vmatprep.subr.mxu0 0.0
        %845 = vmatpush1.msra.mxu0 0.0
        %846 = vmatprep.subr.mxu0 0.0
        %847 = vmatpush1.msra.mxu0 0.0
        %848 = vmatprep.subr.mxu0 0.0
        %849 = vmatpush1.msra.mxu0 0.0
        %850 = vmatprep.subr.mxu0 0.0
        %851 = vmatpush1.msra.mxu0 0.0
        %852 = vmatprep.subr.mxu0 0.0
        %853 = vmatpush1.msra.mxu0 0.0
        %854 = vmatprep.subr.mxu0 0.0
        %855 = vmatpush1.msra.mxu0 0.0
        %856 = vmatprep.subr.mxu0 0.0
        %857 = vmatpush1.msra.mxu0 0.0
        %858 = vmatprep.subr.mxu0 0.0
        %859 = vmatpush1.msra.mxu0 %v638
        %860 = vmatprep.subr.mxu0 0.0
        %861 = vmatpush1.msra.mxu0 %v637
        %862 = vmatprep.subr.mxu0 0.0
        %863 = vmatpush2.msra.mxu0 0.0
        %864 = vmatprep.subr.mxu0 0.0
        %865 = vmatpush2.msra.mxu0 0.0
        %866 = vmatprep.subr.mxu0 0.0
        %867 = vmatpush2.msra.mxu0 0.0
        %868 = vmatprep.subr.mxu0 0.0
        %869 = vmatpush2.msra.mxu0 0.0
        %870 = vmatprep.subr.mxu0 0.0
        %871 = vmatpush2.msra.mxu0 0.0
        %872 = vmatprep.subr.mxu0 0.0
        %873 = vmatpush2.msra.mxu0 0.0
        %874 = vmatprep.subr.mxu0 0.0
        %875 = vmatpush2.msra.mxu0 0.0
        %876 = vmatprep.subr.mxu0 0.0
        %877 = vmatpush2.msra.mxu0 0.0
        %878 = vmatprep.subr.mxu0 0.0
        %879 = vmatpush2.msra.mxu0 0.0
        %880 = vmatprep.subr.mxu0 0.0
        %881 = vmatpush2.msra.mxu0 0.0
        %882 = vmatprep.subr.mxu0 0.0
        %883 = vmatpush2.msra.mxu0 0.0
        %884 = vmatprep.subr.mxu0 0.0
        %885 = vmatpush2.msra.mxu0 0.0
        %886 = vmatprep.subr.mxu0 0.0
        %887 = vmatpush2.msra.mxu0 0.0
        %888 = vmatprep.subr.mxu0 0.0
        %889 = vmatpush2.msra.mxu0 0.0
        %890 = vmatprep.subr.mxu0 0.0
        %891 = vmatpush2.msra.mxu0 0.0
        %892 = vmatprep.subr.mxu0 0.0
        %893 = vmatpush2.msra.mxu0 0.0
        %894 = vmatprep.mubr.f32.mxu0 0.0
        %895 = vmatmul.mubr.f32.gmra.mxu0 %v810
        %v896 = vpop.f32.mrf.mxu0
        %v897 = vadd.f32 %v803, %v896
        %v898 = vpop.f32.mrf.mxu0
        %899 = vmatprep.mubr.f32.mxu0 0.0
        %900 = vmatmul.mubr.f32.gmra.mxu0 %v812
        %v901 = vpop.f32.mrf.mxu0
        %v902 = vadd.f32 %v803, %v901
        %v903 = vpop.f32.mrf.mxu0
        %904 = vmatprep.mubr.f32.mxu0 0.0
        %905 = vmatmul.mubr.f32.gmra.mxu0 %v814
        %v906 = vpop.f32.mrf.mxu0
        %v907 = vadd.f32 %v804, %v906
        %v908 = vpop.f32.mrf.mxu0
        %909 = vmatprep.mubr.f32.mxu0 0.0
        %910 = vmatmul.mubr.f32.gmra.mxu0 %v816
        %v911 = vpop.f32.mrf.mxu0
        %v912 = vadd.f32 %v805, %v911
        %v913 = vpop.f32.mrf.mxu0
        %914 = vmatprep.mubr.f32.mxu0 0.0
        %915 = vmatmul.mubr.f32.gmra.mxu0 %v818
        %v916 = vpop.f32.mrf.mxu0
        %v917 = vadd.f32 %v805, %v916
        %v918 = vpop.f32.mrf.mxu0
        %919 = vmatprep.mubr.f32.mxu0 0.0
        %920 = vmatmul.mubr.f32.gmra.mxu0 %v820
        %v921 = vpop.f32.mrf.mxu0
        %v922 = vadd.f32 %v803, %v921
        %v923 = vpop.f32.mrf.mxu0
        %924 = vmatprep.mubr.f32.mxu0 0.0
        %925 = vmatmul.mubr.f32.gmra.mxu0 %v822
        %v926 = vpop.f32.mrf.mxu0
        %v927 = vadd.f32 %v803, %v926
        %v928 = vpop.f32.mrf.mxu0
        %929 = vmatprep.mubr.f32.mxu0 0.0
        %930 = vmatmul.mubr.f32.gmra.mxu0 %v824
        %v931 = vpop.f32.mrf.mxu0
        %v932 = vadd.f32 %v804, %v931
        %v933 = vpop.f32.mrf.mxu0
        %934 = vmatprep.mubr.f32.mxu0 0.0
        %935 = vmatmul.mubr.f32.gmra.mxu0 %v826
        %v936 = vpop.f32.mrf.mxu0
        %v937 = vadd.f32 %v805, %v936
        %v938 = vpop.f32.mrf.mxu0
        %939 = vmatprep.mubr.f32.mxu0 0.0
        %940 = vmatmul.mubr.f32.gmra.mxu0 %v828
        %v941 = vpop.f32.mrf.mxu0
        %v942 = vadd.f32 %v805, %v941
        %v943 = vpop.f32.mrf.mxu0
        %944 = vdwg.mxu0
        %v955 = vcombine.high %v897, %v897
        %v956 = vcombine.high %v902, %v902
        %v957 = vcombine.high %v907, %v907
        %v958 = vcombine.high %v912, %v912
        %v959 = vcombine.high %v917, %v917
        %v960 = vcombine.high %v922, %v922
        %v961 = vcombine.high %v927, %v927
        %v962 = vcombine.high %v932, %v932
        %v963 = vcombine.high %v937, %v937
        %v964 = vcombine.high %v942, %v942
        %v975 = vadd.f32 %v897, 3.0
        %v976 = vadd.f32 %v955, 3.0
        %v977 = vadd.f32 %v902, 3.0
        %v978 = vadd.f32 %v956, 3.0
        %v979 = vadd.f32 %v907, 3.0
        %v980 = vadd.f32 %v957, 3.0
        %v981 = vadd.f32 %v912, 3.0
        %v982 = vadd.f32 %v958, 3.0
        %v983 = vadd.f32 %v917, 3.0
        %v984 = vadd.f32 %v959, 3.0
        %v985 = vadd.f32 %v922, 3.0
        %v986 = vadd.f32 %v960, 3.0
        %v987 = vadd.f32 %v927, 3.0
        %v988 = vadd.f32 %v961, 3.0
        %v989 = vadd.f32 %v932, 3.0
        %v990 = vadd.f32 %v962, 3.0
        %v991 = vadd.f32 %v937, 3.0
        %v992 = vadd.f32 %v963, 3.0
        %v993 = vadd.f32 %v942, 3.0
        %v994 = vadd.f32 %v964, 3.0
        %v995 = vmax.f32 %v975, 0.0
        %v996 = vmax.f32 %v976, 0.0
        %v997 = vmax.f32 %v977, 0.0
        %v998 = vmax.f32 %v978, 0.0
        %v999 = vmax.f32 %v979, 0.0
        %v1000 = vmax.f32 %v980, 0.0
        %v1001 = vmax.f32 %v981, 0.0
        %v1002 = vmax.f32 %v982, 0.0
        %v1003 = vmax.f32 %v983, 0.0
        %v1004 = vmax.f32 %v984, 0.0
        %v1005 = vmax.f32 %v985, 0.0
        %v1006 = vmax.f32 %v986, 0.0
        %v1007 = vmax.f32 %v987, 0.0
        %v1008 = vmax.f32 %v988, 0.0
        %v1009 = vmax.f32 %v989, 0.0
        %v1010 = vmax.f32 %v990, 0.0
        %v1011 = vmax.f32 %v991, 0.0
        %v1012 = vmax.f32 %v992, 0.0
        %v1013 = vmax.f32 %v993, 0.0
        %v1014 = vmax.f32 %v994, 0.0
        %v1015 = vmin.f32 %v995, 6.0
        %v1016 = vmin.f32 %v996, 6.0
        %v1017 = vmin.f32 %v997, 6.0
        %v1018 = vmin.f32 %v998, 6.0
        %v1019 = vmin.f32 %v999, 6.0
        %v1020 = vmin.f32 %v1000, 6.0
        %v1021 = vmin.f32 %v1001, 6.0
        %v1022 = vmin.f32 %v1002, 6.0
        %v1023 = vmin.f32 %v1003, 6.0
        %v1024 = vmin.f32 %v1004, 6.0
        %v1025 = vmin.f32 %v1005, 6.0
        %v1026 = vmin.f32 %v1006, 6.0
        %v1027 = vmin.f32 %v1007, 6.0
        %v1028 = vmin.f32 %v1008, 6.0
        %v1029 = vmin.f32 %v1009, 6.0
        %v1030 = vmin.f32 %v1010, 6.0
        %v1031 = vmin.f32 %v1011, 6.0
        %v1032 = vmin.f32 %v1012, 6.0
        %v1033 = vmin.f32 %v1013, 6.0
        %v1034 = vmin.f32 %v1014, 6.0
        %v1035 = vmul.f32 %v897, %v1015
        %v1036 = vmul.f32 %v955, %v1016
        %v1037 = vmul.f32 %v902, %v1017
        %v1038 = vmul.f32 %v956, %v1018
        %v1039 = vmul.f32 %v907, %v1019
        %v1040 = vmul.f32 %v957, %v1020
        %v1041 = vmul.f32 %v912, %v1021
        %v1042 = vmul.f32 %v958, %v1022
        %v1043 = vmul.f32 %v917, %v1023
        %v1044 = vmul.f32 %v959, %v1024
        %v1045 = vmul.f32 %v922, %v1025
        %v1046 = vmul.f32 %v960, %v1026
        %v1047 = vmul.f32 %v927, %v1027
        %v1048 = vmul.f32 %v961, %v1028
        %v1049 = vmul.f32 %v932, %v1029
        %v1050 = vmul.f32 %v962, %v1030
        %v1051 = vmul.f32 %v937, %v1031
        %v1052 = vmul.f32 %v963, %v1032
        %v1053 = vmul.f32 %v942, %v1033
        %v1054 = vmul.f32 %v964, %v1034
        %v1055 = vmul.f32 %v1035, 0.16666667
        %v1056 = vmul.f32 %v1036, 0.16666667
        %v1057 = vmul.f32 %v1037, 0.16666667
        %v1058 = vmul.f32 %v1038, 0.16666667
        %v1059 = vmul.f32 %v1039, 0.16666667
        %v1060 = vmul.f32 %v1040, 0.16666667
        %v1061 = vmul.f32 %v1041, 0.16666667
        %v1062 = vmul.f32 %v1042, 0.16666667
        %v1063 = vmul.f32 %v1043, 0.16666667
        %v1064 = vmul.f32 %v1044, 0.16666667
        %v1065 = vmul.f32 %v1045, 0.16666667
        %v1066 = vmul.f32 %v1046, 0.16666667
        %v1067 = vmul.f32 %v1047, 0.16666667
        %v1068 = vmul.f32 %v1048, 0.16666667
        %v1069 = vmul.f32 %v1049, 0.16666667
        %v1070 = vmul.f32 %v1050, 0.16666667
        %v1071 = vmul.f32 %v1051, 0.16666667
        %v1072 = vmul.f32 %v1052, 0.16666667
        %v1073 = vmul.f32 %v1053, 0.16666667
        %v1074 = vmul.f32 %v1054, 0.16666667
        %v1075 = vld [vmem:[#allocation2] sm:$0xf]
        %v1076 = vlaneseq
        %v1077 = vshrl.u32 %v1076, 7
        %v1078 = vsub.s32 0, %v1077
        %v1079 = vrot.slane %v401, %v1078
        %v1096 = vcombine.low %v1055, %v1056
        %v1097 = vcombine.low %v1057, %v1058
        %v1098 = vcombine.low %v1060, %v1061
        %v1099 = vcombine.low %v1062, %v1063
        %v1100 = vcombine.low %v1065, %v1066
        %v1101 = vcombine.low %v1067, %v1068
        %v1102 = vcombine.low %v1070, %v1071
        %v1103 = vcombine.low %v1072, %v1073
        %vm1104 = vcmask 31744
        %v1105 = vsel %vm1104, %v1096, 0
        %v1107 = vsel %vm1104, %v1097, 0
        %v1109 = vsel %vm1104, %v1098, 0
        %v1111 = vsel %vm1104, %v1099, 0
        %v1113 = vsel %vm1104, %v1100, 0
        %v1115 = vsel %vm1104, %v1101, 0
        %v1117 = vsel %vm1104, %v1102, 0
        %v1119 = vsel %vm1104, %v1103, 0
        %vm1121 = vcmask 1043456
        %v1123 = vsel %vm1121, %v1075, 0
        %1125 = vmatprep.subr.mxu0 0.0
        %1126 = vmatpush1.msra.mxu0 0.0
        %1127 = vmatprep.subr.mxu0 0.0
        %1128 = vmatpush1.msra.mxu0 0.0
        %1129 = vmatprep.subr.mxu0 0.0
        %1130 = vmatpush1.msra.mxu0 0.0
        %1131 = vmatprep.subr.mxu0 0.0
        %1132 = vmatpush1.msra.mxu0 0.0
        %1133 = vmatprep.subr.mxu0 0.0
        %1134 = vmatpush1.msra.mxu0 0.0
        %1135 = vmatprep.subr.mxu0 0.0
        %1136 = vmatpush1.msra.mxu0 0.0
        %1137 = vmatprep.subr.mxu0 0.0
        %1138 = vmatpush1.msra.mxu0 0.0
        %1139 = vmatprep.subr.mxu0 0.0
        %1140 = vmatpush1.msra.mxu0 0.0
        %1141 = vmatprep.subr.mxu0 0.0
        %1142 = vmatpush1.msra.mxu0 0.0
        %1143 = vmatprep.subr.mxu0 0.0
        %1144 = vmatpush1.msra.mxu0 0.0
        %1145 = vmatprep.subr.mxu0 0.0
        %1146 = vmatpush1.msra.mxu0 0.0
        %1147 = vmatprep.subr.mxu0 0.0
        %1148 = vmatpush1.msra.mxu0 0.0
        %1149 = vmatprep.subr.mxu0 0.0
        %1150 = vmatpush1.msra.mxu0 0.0
        %1151 = vmatprep.subr.mxu0 0.0
        %1152 = vmatpush1.msra.mxu0 0.0
        %1153 = vmatprep.subr.mxu0 0.0
        %1154 = vmatpush1.msra.mxu0 0.0
        %1155 = vmatprep.subr.mxu0 0.0
        %1156 = vmatpush1.msra.mxu0 %v1123
        %1157 = vmatprep.subr.mxu0 0.0
        %1158 = vmatpush2.msra.mxu0 0.0
        %1159 = vmatprep.subr.mxu0 0.0
        %1160 = vmatpush2.msra.mxu0 0.0
        %1161 = vmatprep.subr.mxu0 0.0
        %1162 = vmatpush2.msra.mxu0 0.0
        %1163 = vmatprep.subr.mxu0 0.0
        %1164 = vmatpush2.msra.mxu0 0.0
        %1165 = vmatprep.subr.mxu0 0.0
        %1166 = vmatpush2.msra.mxu0 0.0
        %1167 = vmatprep.subr.mxu0 0.0
        %1168 = vmatpush2.msra.mxu0 0.0
        %1169 = vmatprep.subr.mxu0 0.0
        %1170 = vmatpush2.msra.mxu0 0.0
        %1171 = vmatprep.subr.mxu0 0.0
        %1172 = vmatpush2.msra.mxu0 0.0
        %1173 = vmatprep.subr.mxu0 0.0
        %1174 = vmatpush2.msra.mxu0 0.0
        %1175 = vmatprep.subr.mxu0 0.0
        %1176 = vmatpush2.msra.mxu0 0.0
        %1177 = vmatprep.subr.mxu0 0.0
        %1178 = vmatpush2.msra.mxu0 0.0
        %1179 = vmatprep.subr.mxu0 0.0
        %1180 = vmatpush2.msra.mxu0 0.0
        %1181 = vmatprep.subr.mxu0 0.0
        %1182 = vmatpush2.msra.mxu0 0.0
        %1183 = vmatprep.subr.mxu0 0.0
        %1184 = vmatpush2.msra.mxu0 0.0
        %1185 = vmatprep.subr.mxu0 0.0
        %1186 = vmatpush2.msra.mxu0 0.0
        %1187 = vmatprep.subr.mxu0 0.0
        %1188 = vmatpush2.msra.mxu0 0.0
        %1189 = vmatprep.mubr.f32.mxu0 0.0
        %1190 = vmatmul.mubr.f32.gmra.mxu0 %v1105
        %v1191 = vpop.f32.mrf.mxu0
        %v1192 = vadd.f32 %v1079, %v1191
        %v1193 = vpop.f32.mrf.mxu0
        %1194 = vmatprep.mubr.f32.mxu0 0.0
        %1195 = vmatmul.mubr.f32.gmra.mxu0 %v1107
        %v1196 = vpop.f32.mrf.mxu0
        %v1197 = vadd.f32 %v1079, %v1196
        %v1198 = vpop.f32.mrf.mxu0
        %1199 = vmatprep.mubr.f32.mxu0 0.0
        %1200 = vmatmul.mubr.f32.gmra.mxu0 %v1109
        %v1201 = vpop.f32.mrf.mxu0
        %v1202 = vadd.f32 %v1079, %v1201
        %v1203 = vpop.f32.mrf.mxu0
        %1204 = vmatprep.mubr.f32.mxu0 0.0
        %1205 = vmatmul.mubr.f32.gmra.mxu0 %v1111
        %v1206 = vpop.f32.mrf.mxu0
        %v1207 = vadd.f32 %v1079, %v1206
        %v1208 = vpop.f32.mrf.mxu0
        %1209 = vmatprep.mubr.f32.mxu0 0.0
        %1210 = vmatmul.mubr.f32.gmra.mxu0 %v1113
        %v1211 = vpop.f32.mrf.mxu0
        %v1212 = vadd.f32 %v1079, %v1211
        %v1213 = vpop.f32.mrf.mxu0
        %1214 = vmatprep.mubr.f32.mxu0 0.0
        %1215 = vmatmul.mubr.f32.gmra.mxu0 %v1115
        %v1216 = vpop.f32.mrf.mxu0
        %v1217 = vadd.f32 %v1079, %v1216
        %v1218 = vpop.f32.mrf.mxu0
        %1219 = vmatprep.mubr.f32.mxu0 0.0
        %1220 = vmatmul.mubr.f32.gmra.mxu0 %v1117
        %v1221 = vpop.f32.mrf.mxu0
        %v1222 = vadd.f32 %v1079, %v1221
        %v1223 = vpop.f32.mrf.mxu0
        %1224 = vmatprep.mubr.f32.mxu0 0.0
        %1225 = vmatmul.mubr.f32.gmra.mxu0 %v1119
        %v1226 = vpop.f32.mrf.mxu0
        %v1227 = vadd.f32 %v1079, %v1226
        %v1228 = vpop.f32.mrf.mxu0
        %1229 = vdwg.mxu0
        %v1230 = vxor.u32 %v1192, 2147483648
        %v1231 = vxor.u32 %v1197, 2147483648
        %v1232 = vxor.u32 %v1202, 2147483648
        %v1233 = vxor.u32 %v1207, 2147483648
        %v1234 = vxor.u32 %v1212, 2147483648
        %v1235 = vxor.u32 %v1217, 2147483648
        %v1236 = vxor.u32 %v1222, 2147483648
        %v1237 = vxor.u32 %v1227, 2147483648
        %v1238 = vmul.f32 %v1230, 1.442695
        %v1239 = vpow.pop %v1238
        %v1240 = vmul.f32 %v1231, 1.442695
        %v1241 = vpow.pop %v1240
        %v1242 = vmul.f32 %v1232, 1.442695
        %v1243 = vpow.pop %v1242
        %v1244 = vmul.f32 %v1233, 1.442695
        %v1245 = vpow.pop %v1244
        %v1246 = vmul.f32 %v1234, 1.442695
        %v1247 = vpow.pop %v1246
        %v1248 = vmul.f32 %v1235, 1.442695
        %v1249 = vpow.pop %v1248
        %v1250 = vmul.f32 %v1236, 1.442695
        %v1251 = vpow.pop %v1250
        %v1252 = vmul.f32 %v1237, 1.442695
        %v1253 = vpow.pop %v1252
        %v1254 = vadd.f32 %v1239, 1.0
        %v1255 = vadd.f32 %v1241, 1.0
        %v1256 = vadd.f32 %v1243, 1.0
        %v1257 = vadd.f32 %v1245, 1.0
        %v1258 = vadd.f32 %v1247, 1.0
        %v1259 = vadd.f32 %v1249, 1.0
        %v1260 = vadd.f32 %v1251, 1.0
        %v1261 = vadd.f32 %v1253, 1.0
        %v1262 = vrcp.pop %v1254
        %v1263 = vmul.f32 1.0, %v1262
        %v1264 = vrcp.pop %v1255
        %v1265 = vmul.f32 1.0, %v1264
        %v1266 = vrcp.pop %v1256
        %v1267 = vmul.f32 1.0, %v1266
        %v1268 = vrcp.pop %v1257
        %v1269 = vmul.f32 1.0, %v1268
        %v1270 = vrcp.pop %v1258
        %v1271 = vmul.f32 1.0, %v1270
        %v1272 = vrcp.pop %v1259
        %v1273 = vmul.f32 1.0, %v1272
        %v1274 = vrcp.pop %v1260
        %v1275 = vmul.f32 1.0, %v1274
        %v1276 = vrcp.pop %v1261
        %v1277 = vmul.f32 1.0, %v1276
        %v1278 = vld [vmem:[#allocation5] sm:$0xf]
        %v1279 = vlaneseq
        %v1280 = vshrl.u32 %v1279, 7
        %v1281 = vsub.s32 0, %v1280
        %v1282 = vrot.slane %v402, %v1281
        %v1287 = vcombine.low %v1059, %v1064
        %v1288 = vcombine.low %v1069, %v1074
        %v1290 = vcombine.low %v1282, %v1282
        %v1292 = vsel %vm1104, %v1287, 0
        %v1294 = vsel %vm1104, %v1288, 0
        %v1297 = vsel %vm1121, %v1278, 0
        %1299 = vmatprep.subr.mxu0 0.0
        %1300 = vmatpush1.msra.mxu0 0.0
        %1301 = vmatprep.subr.mxu0 0.0
        %1302 = vmatpush1.msra.mxu0 0.0
        %1303 = vmatprep.subr.mxu0 0.0
        %1304 = vmatpush1.msra.mxu0 0.0
        %1305 = vmatprep.subr.mxu0 0.0
        %1306 = vmatpush1.msra.mxu0 0.0
        %1307 = vmatprep.subr.mxu0 0.0
        %1308 = vmatpush1.msra.mxu0 0.0
        %1309 = vmatprep.subr.mxu0 0.0
        %1310 = vmatpush1.msra.mxu0 0.0
        %1311 = vmatprep.subr.mxu0 0.0
        %1312 = vmatpush1.msra.mxu0 0.0
        %1313 = vmatprep.subr.mxu0 0.0
        %1314 = vmatpush1.msra.mxu0 0.0
        %1315 = vmatprep.subr.mxu0 0.0
        %1316 = vmatpush1.msra.mxu0 0.0
        %1317 = vmatprep.subr.mxu0 0.0
        %1318 = vmatpush1.msra.mxu0 0.0
        %1319 = vmatprep.subr.mxu0 0.0
        %1320 = vmatpush1.msra.mxu0 0.0
        %1321 = vmatprep.subr.mxu0 0.0
        %1322 = vmatpush1.msra.mxu0 0.0
        %1323 = vmatprep.subr.mxu0 0.0
        %1324 = vmatpush1.msra.mxu0 0.0
        %1325 = vmatprep.subr.mxu0 0.0
        %1326 = vmatpush1.msra.mxu0 0.0
        %1327 = vmatprep.subr.mxu0 0.0
        %1328 = vmatpush1.msra.mxu0 0.0
        %1329 = vmatprep.subr.mxu0 0.0
        %1330 = vmatpush1.msra.mxu0 %v1297
        %1331 = vmatprep.subr.mxu0 0.0
        %1332 = vmatpush2.msra.mxu0 0.0
        %1333 = vmatprep.subr.mxu0 0.0
        %1334 = vmatpush2.msra.mxu0 0.0
        %1335 = vmatprep.subr.mxu0 0.0
        %1336 = vmatpush2.msra.mxu0 0.0
        %1337 = vmatprep.subr.mxu0 0.0
        %1338 = vmatpush2.msra.mxu0 0.0
        %1339 = vmatprep.subr.mxu0 0.0
        %1340 = vmatpush2.msra.mxu0 0.0
        %1341 = vmatprep.subr.mxu0 0.0
        %1342 = vmatpush2.msra.mxu0 0.0
        %1343 = vmatprep.subr.mxu0 0.0
        %1344 = vmatpush2.msra.mxu0 0.0
        %1345 = vmatprep.subr.mxu0 0.0
        %1346 = vmatpush2.msra.mxu0 0.0
        %1347 = vmatprep.subr.mxu0 0.0
        %1348 = vmatpush2.msra.mxu0 0.0
        %1349 = vmatprep.subr.mxu0 0.0
        %1350 = vmatpush2.msra.mxu0 0.0
        %1351 = vmatprep.subr.mxu0 0.0
        %1352 = vmatpush2.msra.mxu0 0.0
        %1353 = vmatprep.subr.mxu0 0.0
        %1354 = vmatpush2.msra.mxu0 0.0
        %1355 = vmatprep.subr.mxu0 0.0
        %1356 = vmatpush2.msra.mxu0 0.0
        %1357 = vmatprep.subr.mxu0 0.0
        %1358 = vmatpush2.msra.mxu0 0.0
        %1359 = vmatprep.subr.mxu0 0.0
        %1360 = vmatpush2.msra.mxu0 0.0
        %1361 = vmatprep.subr.mxu0 0.0
        %1362 = vmatpush2.msra.mxu0 0.0
        %1363 = vmatprep.mubr.f32.mxu0 0.0
        %1364 = vmatmul.mubr.f32.gmra.mxu0 %v1292
        %v1365 = vpop.f32.mrf.mxu0
        %v1366 = vadd.f32 %v1290, %v1365
        %v1367 = vpop.f32.mrf.mxu0
        %1368 = vmatprep.mubr.f32.mxu0 0.0
        %1369 = vmatmul.mubr.f32.gmra.mxu0 %v1294
        %v1370 = vpop.f32.mrf.mxu0
        %v1371 = vadd.f32 %v1290, %v1370
        %v1372 = vpop.f32.mrf.mxu0
        %1373 = vdwg.mxu0
        %v1376 = vcombine.high %v1366, %v1366
        %v1377 = vcombine.high %v1371, %v1371
        %v1380 = vxor.u32 %v1366, 2147483648
        %v1381 = vxor.u32 %v1376, 2147483648
        %v1382 = vxor.u32 %v1371, 2147483648
        %v1383 = vxor.u32 %v1377, 2147483648
        %v1384 = vmul.f32 %v1380, 1.442695
        %v1385 = vpow.pop %v1384
        %v1386 = vmul.f32 %v1381, 1.442695
        %v1387 = vpow.pop %v1386
        %v1388 = vmul.f32 %v1382, 1.442695
        %v1389 = vpow.pop %v1388
        %v1390 = vmul.f32 %v1383, 1.442695
        %v1391 = vpow.pop %v1390
        %v1392 = vadd.f32 %v1385, 1.0
        %v1393 = vadd.f32 %v1387, 1.0
        %v1394 = vadd.f32 %v1389, 1.0
        %v1395 = vadd.f32 %v1391, 1.0
        %v1396 = vrcp.pop %v1392
        %v1397 = vmul.f32 1.0, %v1396
        %v1398 = vrcp.pop %v1393
        %v1399 = vmul.f32 1.0, %v1398
        %v1400 = vrcp.pop %v1394
        %v1401 = vmul.f32 1.0, %v1400
        %v1402 = vrcp.pop %v1395
        %v1403 = vmul.f32 1.0, %v1402
        %v1404 = vlaneseq
        %v1405 = vshrl.u32 %v1404, 7
        %v1406 = vsub.s32 0, %v1405
        %v1407 = vrot.slane %v403, %v1406
        %v1408 = vmul.f32 %v1263, %v1407
        %v1409 = vmul.f32 %v1265, %v1407
        %v1410 = vmul.f32 %v1267, %v1407
        %v1411 = vmul.f32 %v1269, %v1407
        %v1412 = vmul.f32 %v1271, %v1407
        %v1413 = vmul.f32 %v1273, %v1407
        %v1414 = vmul.f32 %v1275, %v1407
        %v1415 = vmul.f32 %v1277, %v1407
        %v1416 = vld [vmem:[%s2] sm:$0xff]
        %v1417 = vld [vmem:[%s2 + $0x8] sm:$0xff]
        %v1418 = vld [vmem:[%s2 + $0x10] sm:$0xff]
        %v1419 = vld [vmem:[%s2 + $0x18] sm:$0xff]
        %1420 = vxpose.xlu0.b32.start [1/16] %v1408, 128
        %1421 = vxpose.xlu0.b32.cont [2/16] %v1409, 128
        %1422 = vxpose.xlu0.b32.cont [3/16] 0.0, 128
        %1423 = vxpose.xlu0.b32.cont [4/16] 0.0, 128
        %1424 = vxpose.xlu0.b32.cont [5/16] 0.0, 128
        %1425 = vxpose.xlu0.b32.cont [6/16] 0.0, 128
        %1426 = vxpose.xlu0.b32.cont [7/16] 0.0, 128
        %1427 = vxpose.xlu0.b32.cont [8/16] 0.0, 128
        %1428 = vxpose.xlu0.b32.cont [9/16] 0.0, 128
        %1429 = vxpose.xlu0.b32.cont [10/16] 0.0, 128
        %1430 = vxpose.xlu0.b32.cont [11/16] 0.0, 128
        %1431 = vxpose.xlu0.b32.cont [12/16] 0.0, 128
        %1432 = vxpose.xlu0.b32.cont [13/16] 0.0, 128
        %1433 = vxpose.xlu0.b32.cont [14/16] 0.0, 128
        %1434 = vxpose.xlu0.b32.cont [15/16] 0.0, 128
        %1435 = vxpose.xlu0.b32.end [16/16] 0.0, 128
        %v1436 = vpop.trf.xlu0
        %v1437 = vpop.trf.xlu0
        %v1438 = vpop.trf.xlu0
        %v1439 = vpop.trf.xlu0
        %v1440 = vpop.trf.xlu0
        %v1441 = vpop.trf.xlu0
        %v1442 = vpop.trf.xlu0
        %v1443 = vpop.trf.xlu0
        %v1444 = vpop.trf.xlu0
        %v1445 = vpop.trf.xlu0
        %v1446 = vpop.trf.xlu0
        %v1447 = vpop.trf.xlu0
        %v1448 = vpop.trf.xlu0
        %v1449 = vpop.trf.xlu0
        %v1450 = vpop.trf.xlu0
        %v1451 = vpop.trf.xlu0
        %1452 = vxpose.xlu0.b32.start [1/16] %v1410, 128
        %1453 = vxpose.xlu0.b32.cont [2/16] %v1411, 128
        %1454 = vxpose.xlu0.b32.cont [3/16] 0.0, 128
        %1455 = vxpose.xlu0.b32.cont [4/16] 0.0, 128
        %1456 = vxpose.xlu0.b32.cont [5/16] 0.0, 128
        %1457 = vxpose.xlu0.b32.cont [6/16] 0.0, 128
        %1458 = vxpose.xlu0.b32.cont [7/16] 0.0, 128
        %1459 = vxpose.xlu0.b32.cont [8/16] 0.0, 128
        %1460 = vxpose.xlu0.b32.cont [9/16] 0.0, 128
        %1461 = vxpose.xlu0.b32.cont [10/16] 0.0, 128
        %1462 = vxpose.xlu0.b32.cont [11/16] 0.0, 128
        %1463 = vxpose.xlu0.b32.cont [12/16] 0.0, 128
        %1464 = vxpose.xlu0.b32.cont [13/16] 0.0, 128
        %1465 = vxpose.xlu0.b32.cont [14/16] 0.0, 128
        %1466 = vxpose.xlu0.b32.cont [15/16] 0.0, 128
        %1467 = vxpose.xlu0.b32.end [16/16] 0.0, 128
        %v1468 = vpop.trf.xlu0
        %v1469 = vpop.trf.xlu0
        %v1470 = vpop.trf.xlu0
        %v1471 = vpop.trf.xlu0
        %v1472 = vpop.trf.xlu0
        %v1473 = vpop.trf.xlu0
        %v1474 = vpop.trf.xlu0
        %v1475 = vpop.trf.xlu0
        %v1476 = vpop.trf.xlu0
        %v1477 = vpop.trf.xlu0
        %v1478 = vpop.trf.xlu0
        %v1479 = vpop.trf.xlu0
        %v1480 = vpop.trf.xlu0
        %v1481 = vpop.trf.xlu0
        %v1482 = vpop.trf.xlu0
        %v1483 = vpop.trf.xlu0
        %1484 = vxpose.xlu0.b32.start [1/16] %v1412, 128
        %1485 = vxpose.xlu0.b32.cont [2/16] %v1413, 128
        %1486 = vxpose.xlu0.b32.cont [3/16] 0.0, 128
        %1487 = vxpose.xlu0.b32.cont [4/16] 0.0, 128
        %1488 = vxpose.xlu0.b32.cont [5/16] 0.0, 128
        %1489 = vxpose.xlu0.b32.cont [6/16] 0.0, 128
        %1490 = vxpose.xlu0.b32.cont [7/16] 0.0, 128
        %1491 = vxpose.xlu0.b32.cont [8/16] 0.0, 128
        %1492 = vxpose.xlu0.b32.cont [9/16] 0.0, 128
        %1493 = vxpose.xlu0.b32.cont [10/16] 0.0, 128
        %1494 = vxpose.xlu0.b32.cont [11/16] 0.0, 128
        %1495 = vxpose.xlu0.b32.cont [12/16] 0.0, 128
        %1496 = vxpose.xlu0.b32.cont [13/16] 0.0, 128
        %1497 = vxpose.xlu0.b32.cont [14/16] 0.0, 128
        %1498 = vxpose.xlu0.b32.cont [15/16] 0.0, 128
        %1499 = vxpose.xlu0.b32.end [16/16] 0.0, 128
        %v1500 = vpop.trf.xlu0
        %v1501 = vpop.trf.xlu0
        %v1502 = vpop.trf.xlu0
        %v1503 = vpop.trf.xlu0
        %v1504 = vpop.trf.xlu0
        %v1505 = vpop.trf.xlu0
        %v1506 = vpop.trf.xlu0
        %v1507 = vpop.trf.xlu0
        %v1508 = vpop.trf.xlu0
        %v1509 = vpop.trf.xlu0
        %v1510 = vpop.trf.xlu0
        %v1511 = vpop.trf.xlu0
        %v1512 = vpop.trf.xlu0
        %v1513 = vpop.trf.xlu0
        %v1514 = vpop.trf.xlu0
        %v1515 = vpop.trf.xlu0
        %1516 = vxpose.xlu0.b32.start [1/16] %v1414, 128
        %1517 = vxpose.xlu0.b32.cont [2/16] %v1415, 128
        %1518 = vxpose.xlu0.b32.cont [3/16] 0.0, 128
        %1519 = vxpose.xlu0.b32.cont [4/16] 0.0, 128
        %1520 = vxpose.xlu0.b32.cont [5/16] 0.0, 128
        %1521 = vxpose.xlu0.b32.cont [6/16] 0.0, 128
        %1522 = vxpose.xlu0.b32.cont [7/16] 0.0, 128
        %1523 = vxpose.xlu0.b32.cont [8/16] 0.0, 128
        %1524 = vxpose.xlu0.b32.cont [9/16] 0.0, 128
        %1525 = vxpose.xlu0.b32.cont [10/16] 0.0, 128
        %1526 = vxpose.xlu0.b32.cont [11/16] 0.0, 128
        %1527 = vxpose.xlu0.b32.cont [12/16] 0.0, 128
        %1528 = vxpose.xlu0.b32.cont [13/16] 0.0, 128
        %1529 = vxpose.xlu0.b32.cont [14/16] 0.0, 128
        %1530 = vxpose.xlu0.b32.cont [15/16] 0.0, 128
        %1531 = vxpose.xlu0.b32.end [16/16] 0.0, 128
        %v1532 = vpop.trf.xlu0
        %v1533 = vpop.trf.xlu0
        %v1534 = vpop.trf.xlu0
        %v1535 = vpop.trf.xlu0
        %v1536 = vpop.trf.xlu0
        %v1537 = vpop.trf.xlu0
        %v1538 = vpop.trf.xlu0
        %v1539 = vpop.trf.xlu0
        %v1540 = vpop.trf.xlu0
        %v1541 = vpop.trf.xlu0
        %v1542 = vpop.trf.xlu0
        %v1543 = vpop.trf.xlu0
        %v1544 = vpop.trf.xlu0
        %v1545 = vpop.trf.xlu0
        %v1546 = vpop.trf.xlu0
        %v1547 = vpop.trf.xlu0
        %v1549 = vsel %vm809, %v1436, 0
        %v1552 = vsel %vm809, %v1437, 0
        %v1555 = vsel %vm809, %v1468, 0
        %v1558 = vsel %vm809, %v1469, 0
        %v1561 = vsel %vm809, %v1500, 0
        %v1564 = vsel %vm809, %v1501, 0
        %v1567 = vsel %vm809, %v1532, 0
        %v1570 = vsel %vm809, %v1533, 0
        %1572 = vmatprep.subr.mxu0 0.0
        %1573 = vmatpush1.msra.mxu0 0.0
        %1574 = vmatprep.subr.mxu0 0.0
        %1575 = vmatpush1.msra.mxu0 0.0
        %1576 = vmatprep.subr.mxu0 0.0
        %1577 = vmatpush1.msra.mxu0 0.0
        %1578 = vmatprep.subr.mxu0 0.0
        %1579 = vmatpush1.msra.mxu0 0.0
        %1580 = vmatprep.subr.mxu0 0.0
        %1581 = vmatpush1.msra.mxu0 0.0
        %1582 = vmatprep.subr.mxu0 0.0
        %1583 = vmatpush1.msra.mxu0 0.0
        %1584 = vmatprep.subr.mxu0 0.0
        %1585 = vmatpush1.msra.mxu0 0.0
        %1586 = vmatprep.subr.mxu0 0.0
        %1587 = vmatpush1.msra.mxu0 0.0
        %1588 = vmatprep.subr.mxu0 0.0
        %1589 = vmatpush1.msra.mxu0 0.0
        %1590 = vmatprep.subr.mxu0 0.0
        %1591 = vmatpush1.msra.mxu0 0.0
        %1592 = vmatprep.subr.mxu0 0.0
        %1593 = vmatpush1.msra.mxu0 0.0
        %1594 = vmatprep.subr.mxu0 0.0
        %1595 = vmatpush1.msra.mxu0 0.0
        %1596 = vmatprep.subr.mxu0 0.0
        %1597 = vmatpush1.msra.mxu0 0.0
        %1598 = vmatprep.subr.mxu0 0.0
        %1599 = vmatpush1.msra.mxu0 0.0
        %1600 = vmatprep.subr.mxu0 %v1419
        %1601 = vmatpush1.msra.mxu0 %v1418
        %1602 = vmatprep.subr.mxu0 %v1417
        %1603 = vmatpush1.msra.mxu0 %v1416
        %1604 = vmatprep.subr.mxu0 0.0
        %1605 = vmatpush2.msra.mxu0 0.0
        %1606 = vmatprep.subr.mxu0 0.0
        %1607 = vmatpush2.msra.mxu0 0.0
        %1608 = vmatprep.subr.mxu0 0.0
        %1609 = vmatpush2.msra.mxu0 0.0
        %1610 = vmatprep.subr.mxu0 0.0
        %1611 = vmatpush2.msra.mxu0 0.0
        %1612 = vmatprep.subr.mxu0 0.0
        %1613 = vmatpush2.msra.mxu0 0.0
        %1614 = vmatprep.subr.mxu0 0.0
        %1615 = vmatpush2.msra.mxu0 0.0
        %1616 = vmatprep.subr.mxu0 0.0
        %1617 = vmatpush2.msra.mxu0 0.0
        %1618 = vmatprep.subr.mxu0 0.0
        %1619 = vmatpush2.msra.mxu0 0.0
        %1620 = vmatprep.subr.mxu0 0.0
        %1621 = vmatpush2.msra.mxu0 0.0
        %1622 = vmatprep.subr.mxu0 0.0
        %1623 = vmatpush2.msra.mxu0 0.0
        %1624 = vmatprep.subr.mxu0 0.0
        %1625 = vmatpush2.msra.mxu0 0.0
        %1626 = vmatprep.subr.mxu0 0.0
        %1627 = vmatpush2.msra.mxu0 0.0
        %1628 = vmatprep.subr.mxu0 0.0
        %1629 = vmatpush2.msra.mxu0 0.0
        %1630 = vmatprep.subr.mxu0 0.0
        %1631 = vmatpush2.msra.mxu0 0.0
        %1632 = vmatprep.subr.mxu0 0.0
        %1633 = vmatpush2.msra.mxu0 0.0
        %1634 = vmatprep.subr.mxu0 0.0
        %1635 = vmatpush2.msra.mxu0 0.0
        %1636 = vmatprep.mubr.f32.mxu0 0.0
        %1637 = vmatmul.mubr.f32.gmra.mxu0 %v1549
        %v1638 = vpop.f32.mrf.mxu0
        %v1639 = vadd.f32 0.0, %v1638
        %v1640 = vpop.f32.mrf.mxu0
        %v1641 = vadd.f32 0.0, %v1640
        %1642 = vmatprep.mubr.f32.mxu0 0.0
        %1643 = vmatmul.mubr.f32.gmra.mxu0 %v1552
        %v1644 = vpop.f32.mrf.mxu0
        %v1645 = vadd.f32 0.0, %v1644
        %v1646 = vpop.f32.mrf.mxu0
        %v1647 = vadd.f32 0.0, %v1646
        %1648 = vmatprep.mubr.f32.mxu0 0.0
        %1649 = vmatmul.mubr.f32.gmra.mxu0 %v1555
        %v1650 = vpop.f32.mrf.mxu0
        %v1651 = vadd.f32 0.0, %v1650
        %v1652 = vpop.f32.mrf.mxu0
        %v1653 = vadd.f32 0.0, %v1652
        %1654 = vmatprep.mubr.f32.mxu0 0.0
        %1655 = vmatmul.mubr.f32.gmra.mxu0 %v1558
        %v1656 = vpop.f32.mrf.mxu0
        %v1657 = vadd.f32 0.0, %v1656
        %v1658 = vpop.f32.mrf.mxu0
        %v1659 = vadd.f32 0.0, %v1658
        %1660 = vmatprep.mubr.f32.mxu0 0.0
        %1661 = vmatmul.mubr.f32.gmra.mxu0 %v1561
        %v1662 = vpop.f32.mrf.mxu0
        %v1663 = vadd.f32 0.0, %v1662
        %v1664 = vpop.f32.mrf.mxu0
        %v1665 = vadd.f32 0.0, %v1664
        %1666 = vmatprep.mubr.f32.mxu0 0.0
        %1667 = vmatmul.mubr.f32.gmra.mxu0 %v1564
        %v1668 = vpop.f32.mrf.mxu0
        %v1669 = vadd.f32 0.0, %v1668
        %v1670 = vpop.f32.mrf.mxu0
        %v1671 = vadd.f32 0.0, %v1670
        %1672 = vmatprep.mubr.f32.mxu0 0.0
        %1673 = vmatmul.mubr.f32.gmra.mxu0 %v1567
        %v1674 = vpop.f32.mrf.mxu0
        %v1675 = vadd.f32 0.0, %v1674
        %v1676 = vpop.f32.mrf.mxu0
        %v1677 = vadd.f32 0.0, %v1676
        %1678 = vmatprep.mubr.f32.mxu0 0.0
        %1679 = vmatmul.mubr.f32.gmra.mxu0 %v1570
        %v1680 = vpop.f32.mrf.mxu0
        %v1681 = vadd.f32 0.0, %v1680
        %v1682 = vpop.f32.mrf.mxu0
        %v1683 = vadd.f32 0.0, %v1682
        %1684 = vdwg.mxu0
        %v1685 = vld [vmem:[%s3] sm:$0xff]
        %1686 = vxpose.xlu0.b32.start [1/16] %v1397, 128
        %1687 = vxpose.xlu0.b32.cont [2/16] 0.0, 128
        %1688 = vxpose.xlu0.b32.cont [3/16] 0.0, 128
        %1689 = vxpose.xlu0.b32.cont [4/16] 0.0, 128
        %1690 = vxpose.xlu0.b32.cont [5/16] 0.0, 128
        %1691 = vxpose.xlu0.b32.cont [6/16] 0.0, 128
        %1692 = vxpose.xlu0.b32.cont [7/16] 0.0, 128
        %1693 = vxpose.xlu0.b32.cont [8/16] 0.0, 128
        %1694 = vxpose.xlu0.b32.cont [9/16] 0.0, 128
        %1695 = vxpose.xlu0.b32.cont [10/16] 0.0, 128
        %1696 = vxpose.xlu0.b32.cont [11/16] 0.0, 128
        %1697 = vxpose.xlu0.b32.cont [12/16] 0.0, 128
        %1698 = vxpose.xlu0.b32.cont [13/16] 0.0, 128
        %1699 = vxpose.xlu0.b32.cont [14/16] 0.0, 128
        %1700 = vxpose.xlu0.b32.cont [15/16] 0.0, 128
        %1701 = vxpose.xlu0.b32.end [16/16] 0.0, 128
        %v1702 = vpop.trf.xlu0
        %v1703 = vpop.trf.xlu0
        %v1704 = vpop.trf.xlu0
        %v1705 = vpop.trf.xlu0
        %v1706 = vpop.trf.xlu0
        %v1707 = vpop.trf.xlu0
        %v1708 = vpop.trf.xlu0
        %v1709 = vpop.trf.xlu0
        %v1710 = vpop.trf.xlu0
        %v1711 = vpop.trf.xlu0
        %v1712 = vpop.trf.xlu0
        %v1713 = vpop.trf.xlu0
        %v1714 = vpop.trf.xlu0
        %v1715 = vpop.trf.xlu0
        %v1716 = vpop.trf.xlu0
        %v1717 = vpop.trf.xlu0
        %1718 = vxpose.xlu0.b32.start [1/16] %v1399, 128
        %1719 = vxpose.xlu0.b32.cont [2/16] 0.0, 128
        %1720 = vxpose.xlu0.b32.cont [3/16] 0.0, 128
        %1721 = vxpose.xlu0.b32.cont [4/16] 0.0, 128
        %1722 = vxpose.xlu0.b32.cont [5/16] 0.0, 128
        %1723 = vxpose.xlu0.b32.cont [6/16] 0.0, 128
        %1724 = vxpose.xlu0.b32.cont [7/16] 0.0, 128
        %1725 = vxpose.xlu0.b32.cont [8/16] 0.0, 128
        %1726 = vxpose.xlu0.b32.cont [9/16] 0.0, 128
        %1727 = vxpose.xlu0.b32.cont [10/16] 0.0, 128
        %1728 = vxpose.xlu0.b32.cont [11/16] 0.0, 128
        %1729 = vxpose.xlu0.b32.cont [12/16] 0.0, 128
        %1730 = vxpose.xlu0.b32.cont [13/16] 0.0, 128
        %1731 = vxpose.xlu0.b32.cont [14/16] 0.0, 128
        %1732 = vxpose.xlu0.b32.cont [15/16] 0.0, 128
        %1733 = vxpose.xlu0.b32.end [16/16] 0.0, 128
        %v1734 = vpop.trf.xlu0
        %v1735 = vpop.trf.xlu0
        %v1736 = vpop.trf.xlu0
        %v1737 = vpop.trf.xlu0
        %v1738 = vpop.trf.xlu0
        %v1739 = vpop.trf.xlu0
        %v1740 = vpop.trf.xlu0
        %v1741 = vpop.trf.xlu0
        %v1742 = vpop.trf.xlu0
        %v1743 = vpop.trf.xlu0
        %v1744 = vpop.trf.xlu0
        %v1745 = vpop.trf.xlu0
        %v1746 = vpop.trf.xlu0
        %v1747 = vpop.trf.xlu0
        %v1748 = vpop.trf.xlu0
        %v1749 = vpop.trf.xlu0
        %1750 = vxpose.xlu0.b32.start [1/16] %v1401, 128
        %1751 = vxpose.xlu0.b32.cont [2/16] 0.0, 128
        %1752 = vxpose.xlu0.b32.cont [3/16] 0.0, 128
        %1753 = vxpose.xlu0.b32.cont [4/16] 0.0, 128
        %1754 = vxpose.xlu0.b32.cont [5/16] 0.0, 128
        %1755 = vxpose.xlu0.b32.cont [6/16] 0.0, 128
        %1756 = vxpose.xlu0.b32.cont [7/16] 0.0, 128
        %1757 = vxpose.xlu0.b32.cont [8/16] 0.0, 128
        %1758 = vxpose.xlu0.b32.cont [9/16] 0.0, 128
        %1759 = vxpose.xlu0.b32.cont [10/16] 0.0, 128
        %1760 = vxpose.xlu0.b32.cont [11/16] 0.0, 128
        %1761 = vxpose.xlu0.b32.cont [12/16] 0.0, 128
        %1762 = vxpose.xlu0.b32.cont [13/16] 0.0, 128
        %1763 = vxpose.xlu0.b32.cont [14/16] 0.0, 128
        %1764 = vxpose.xlu0.b32.cont [15/16] 0.0, 128
        %1765 = vxpose.xlu0.b32.end [16/16] 0.0, 128
        %v1766 = vpop.trf.xlu0
        %v1767 = vpop.trf.xlu0
        %v1768 = vpop.trf.xlu0
        %v1769 = vpop.trf.xlu0
        %v1770 = vpop.trf.xlu0
        %v1771 = vpop.trf.xlu0
        %v1772 = vpop.trf.xlu0
        %v1773 = vpop.trf.xlu0
        %v1774 = vpop.trf.xlu0
        %v1775 = vpop.trf.xlu0
        %v1776 = vpop.trf.xlu0
        %v1777 = vpop.trf.xlu0
        %v1778 = vpop.trf.xlu0
        %v1779 = vpop.trf.xlu0
        %v1780 = vpop.trf.xlu0
        %v1781 = vpop.trf.xlu0
        %1782 = vxpose.xlu0.b32.start [1/16] %v1403, 128
        %1783 = vxpose.xlu0.b32.cont [2/16] 0.0, 128
        %1784 = vxpose.xlu0.b32.cont [3/16] 0.0, 128
        %1785 = vxpose.xlu0.b32.cont [4/16] 0.0, 128
        %1786 = vxpose.xlu0.b32.cont [5/16] 0.0, 128
        %1787 = vxpose.xlu0.b32.cont [6/16] 0.0, 128
        %1788 = vxpose.xlu0.b32.cont [7/16] 0.0, 128
        %1789 = vxpose.xlu0.b32.cont [8/16] 0.0, 128
        %1790 = vxpose.xlu0.b32.cont [9/16] 0.0, 128
        %1791 = vxpose.xlu0.b32.cont [10/16] 0.0, 128
        %1792 = vxpose.xlu0.b32.cont [11/16] 0.0, 128
        %1793 = vxpose.xlu0.b32.cont [12/16] 0.0, 128
        %1794 = vxpose.xlu0.b32.cont [13/16] 0.0, 128
        %1795 = vxpose.xlu0.b32.cont [14/16] 0.0, 128
        %1796 = vxpose.xlu0.b32.cont [15/16] 0.0, 128
        %1797 = vxpose.xlu0.b32.end [16/16] 0.0, 128
        %v1798 = vpop.trf.xlu0
        %v1799 = vpop.trf.xlu0
        %v1800 = vpop.trf.xlu0
        %v1801 = vpop.trf.xlu0
        %v1802 = vpop.trf.xlu0
        %v1803 = vpop.trf.xlu0
        %v1804 = vpop.trf.xlu0
        %v1805 = vpop.trf.xlu0
        %v1806 = vpop.trf.xlu0
        %v1807 = vpop.trf.xlu0
        %v1808 = vpop.trf.xlu0
        %v1809 = vpop.trf.xlu0
        %v1810 = vpop.trf.xlu0
        %v1811 = vpop.trf.xlu0
        %v1812 = vpop.trf.xlu0
        %v1813 = vpop.trf.xlu0
        %v1815 = vcombine.high %v1685, %v1685
        %v1817 = vsel %vm1104, %v1702, 0
        %v1820 = vsel %vm1104, %v1703, 0
        %v1823 = vsel %vm1104, %v1734, 0
        %v1826 = vsel %vm1104, %v1735, 0
        %v1829 = vsel %vm1104, %v1766, 0
        %v1832 = vsel %vm1104, %v1767, 0
        %v1835 = vsel %vm1104, %v1798, 0
        %v1838 = vsel %vm1104, %v1799, 0
        %v1840 = vsel %vm1121, %v1685, 0
        %v1842 = vsel %vm1121, %v1815, 0
        %1844 = vmatprep.subr.mxu0 0.0
        %1845 = vmatpush1.msra.mxu0 0.0
        %1846 = vmatprep.subr.mxu0 0.0
        %1847 = vmatpush1.msra.mxu0 0.0
        %1848 = vmatprep.subr.mxu0 0.0
        %1849 = vmatpush1.msra.mxu0 0.0
        %1850 = vmatprep.subr.mxu0 0.0
        %1851 = vmatpush1.msra.mxu0 0.0
        %1852 = vmatprep.subr.mxu0 0.0
        %1853 = vmatpush1.msra.mxu0 0.0
        %1854 = vmatprep.subr.mxu0 0.0
        %1855 = vmatpush1.msra.mxu0 0.0
        %1856 = vmatprep.subr.mxu0 0.0
        %1857 = vmatpush1.msra.mxu0 0.0
        %1858 = vmatprep.subr.mxu0 0.0
        %1859 = vmatpush1.msra.mxu0 0.0
        %1860 = vmatprep.subr.mxu0 0.0
        %1861 = vmatpush1.msra.mxu0 0.0
        %1862 = vmatprep.subr.mxu0 0.0
        %1863 = vmatpush1.msra.mxu0 0.0
        %1864 = vmatprep.subr.mxu0 0.0
        %1865 = vmatpush1.msra.mxu0 0.0
        %1866 = vmatprep.subr.mxu0 0.0
        %1867 = vmatpush1.msra.mxu0 0.0
        %1868 = vmatprep.subr.mxu0 0.0
        %1869 = vmatpush1.msra.mxu0 0.0
        %1870 = vmatprep.subr.mxu0 0.0
        %1871 = vmatpush1.msra.mxu0 0.0
        %1872 = vmatprep.subr.mxu0 0.0
        %1873 = vmatpush1.msra.mxu0 0.0
        %1874 = vmatprep.subr.mxu0 %v1842
        %1875 = vmatpush1.msra.mxu0 %v1840
        %1876 = vmatprep.subr.mxu0 0.0
        %1877 = vmatpush2.msra.mxu0 0.0
        %1878 = vmatprep.subr.mxu0 0.0
        %1879 = vmatpush2.msra.mxu0 0.0
        %1880 = vmatprep.subr.mxu0 0.0
        %1881 = vmatpush2.msra.mxu0 0.0
        %1882 = vmatprep.subr.mxu0 0.0
        %1883 = vmatpush2.msra.mxu0 0.0
        %1884 = vmatprep.subr.mxu0 0.0
        %1885 = vmatpush2.msra.mxu0 0.0
        %1886 = vmatprep.subr.mxu0 0.0
        %1887 = vmatpush2.msra.mxu0 0.0
        %1888 = vmatprep.subr.mxu0 0.0
        %1889 = vmatpush2.msra.mxu0 0.0
        %1890 = vmatprep.subr.mxu0 0.0
        %1891 = vmatpush2.msra.mxu0 0.0
        %1892 = vmatprep.subr.mxu0 0.0
        %1893 = vmatpush2.msra.mxu0 0.0
        %1894 = vmatprep.subr.mxu0 0.0
        %1895 = vmatpush2.msra.mxu0 0.0
        %1896 = vmatprep.subr.mxu0 0.0
        %1897 = vmatpush2.msra.mxu0 0.0
        %1898 = vmatprep.subr.mxu0 0.0
        %1899 = vmatpush2.msra.mxu0 0.0
        %1900 = vmatprep.subr.mxu0 0.0
        %1901 = vmatpush2.msra.mxu0 0.0
        %1902 = vmatprep.subr.mxu0 0.0
        %1903 = vmatpush2.msra.mxu0 0.0
        %1904 = vmatprep.subr.mxu0 0.0
        %1905 = vmatpush2.msra.mxu0 0.0
        %1906 = vmatprep.subr.mxu0 0.0
        %1907 = vmatpush2.msra.mxu0 0.0
        %1908 = vmatprep.mubr.f32.mxu0 0.0
        %1909 = vmatmul.mubr.f32.gmra.mxu0 %v1817
        %v1910 = vpop.f32.mrf.mxu0
        %v1911 = vadd.f32 0.0, %v1910
        %v1912 = vpop.f32.mrf.mxu0
        %v1913 = vadd.f32 0.0, %v1912
        %1914 = vmatprep.mubr.f32.mxu0 0.0
        %1915 = vmatmul.mubr.f32.gmra.mxu0 %v1820
        %v1916 = vpop.f32.mrf.mxu0
        %v1917 = vadd.f32 0.0, %v1916
        %v1918 = vpop.f32.mrf.mxu0
        %v1919 = vadd.f32 0.0, %v1918
        %1920 = vmatprep.mubr.f32.mxu0 0.0
        %1921 = vmatmul.mubr.f32.gmra.mxu0 %v1823
        %v1922 = vpop.f32.mrf.mxu0
        %v1923 = vadd.f32 0.0, %v1922
        %v1924 = vpop.f32.mrf.mxu0
        %v1925 = vadd.f32 0.0, %v1924
        %1926 = vmatprep.mubr.f32.mxu0 0.0
        %1927 = vmatmul.mubr.f32.gmra.mxu0 %v1826
        %v1928 = vpop.f32.mrf.mxu0
        %v1929 = vadd.f32 0.0, %v1928
        %v1930 = vpop.f32.mrf.mxu0
        %v1931 = vadd.f32 0.0, %v1930
        %1932 = vmatprep.mubr.f32.mxu0 0.0
        %1933 = vmatmul.mubr.f32.gmra.mxu0 %v1829
        %v1934 = vpop.f32.mrf.mxu0
        %v1935 = vadd.f32 0.0, %v1934
        %v1936 = vpop.f32.mrf.mxu0
        %v1937 = vadd.f32 0.0, %v1936
        %1938 = vmatprep.mubr.f32.mxu0 0.0
        %1939 = vmatmul.mubr.f32.gmra.mxu0 %v1832
        %v1940 = vpop.f32.mrf.mxu0
        %v1941 = vadd.f32 0.0, %v1940
        %v1942 = vpop.f32.mrf.mxu0
        %v1943 = vadd.f32 0.0, %v1942
        %1944 = vmatprep.mubr.f32.mxu0 0.0
        %1945 = vmatmul.mubr.f32.gmra.mxu0 %v1835
        %v1946 = vpop.f32.mrf.mxu0
        %v1947 = vadd.f32 0.0, %v1946
        %v1948 = vpop.f32.mrf.mxu0
        %v1949 = vadd.f32 0.0, %v1948
        %1950 = vmatprep.mubr.f32.mxu0 0.0
        %1951 = vmatmul.mubr.f32.gmra.mxu0 %v1838
        %v1952 = vpop.f32.mrf.mxu0
        %v1953 = vadd.f32 0.0, %v1952
        %v1954 = vpop.f32.mrf.mxu0
        %v1955 = vadd.f32 0.0, %v1954
        %1956 = vdwg.mxu0
        %v1957 = vmul.f32 %v1639, %v1911
        %v1958 = vmul.f32 %v1641, %v1913
        %v1959 = vmul.f32 %v1645, %v1917
        %v1960 = vmul.f32 %v1647, %v1919
        %v1961 = vmul.f32 %v1651, %v1923
        %v1962 = vmul.f32 %v1653, %v1925
        %v1963 = vmul.f32 %v1657, %v1929
        %v1964 = vmul.f32 %v1659, %v1931
        %v1965 = vmul.f32 %v1663, %v1935
        %v1966 = vmul.f32 %v1665, %v1937
        %v1967 = vmul.f32 %v1669, %v1941
        %v1968 = vmul.f32 %v1671, %v1943
        %v1969 = vmul.f32 %v1675, %v1947
        %v1970 = vmul.f32 %v1677, %v1949
        %v1971 = vmul.f32 %v1681, %v1953
        %v1972 = vmul.f32 %v1683, %v1955
        %v1973 = vadd.f32 %v1957, 1.0
        %v1974 = vadd.f32 %v1958, 1.0
        %v1975 = vadd.f32 %v1959, 1.0
        %v1976 = vadd.f32 %v1960, 1.0
        %v1977 = vadd.f32 %v1961, 1.0
        %v1978 = vadd.f32 %v1962, 1.0
        %v1979 = vadd.f32 %v1963, 1.0
        %v1980 = vadd.f32 %v1964, 1.0
        %v1981 = vadd.f32 %v1965, 1.0
        %v1982 = vadd.f32 %v1966, 1.0
        %v1983 = vadd.f32 %v1967, 1.0
        %v1984 = vadd.f32 %v1968, 1.0
        %v1985 = vadd.f32 %v1969, 1.0
        %v1986 = vadd.f32 %v1970, 1.0
        %v1987 = vadd.f32 %v1971, 1.0
        %v1988 = vadd.f32 %v1972, 1.0
        %v1989 = vmul.f32 %v384, %v1973
        %v1990 = vmul.f32 %v385, %v1974
        %v1991 = vmul.f32 %v386, %v1975
        %v1992 = vmul.f32 %v387, %v1976
        %v1993 = vmul.f32 %v388, %v1977
        %v1994 = vmul.f32 %v389, %v1978
        %v1995 = vmul.f32 %v390, %v1979
        %v1996 = vmul.f32 %v391, %v1980
        %v1997 = vmul.f32 %v392, %v1981
        %v1998 = vmul.f32 %v393, %v1982
        %v1999 = vmul.f32 %v394, %v1983
        %v2000 = vmul.f32 %v395, %v1984
        %v2001 = vmul.f32 %v396, %v1985
        %v2002 = vmul.f32 %v397, %v1986
        %v2003 = vmul.f32 %v398, %v1987
        %v2004 = vmul.f32 %v399, %v1988
        %v2005 = vld [vmem:[%s8] sm:$0xff]
        %v2006 = vld [vmem:[%s8 + $0x8] sm:$0xff]
        %2008 = vset.pattern.permute.xlu0 0
        %2009 = vperm.xlu0 %2008, %v2005
        %v2010 = vpop.permute.xlu0 %2009
        %2013 = vset.pattern.permute.xlu0 0
        %2014 = vperm.xlu0 %2013, %v2006
        %v2015 = vpop.permute.xlu0 %2014
        %v2017 = vadd.f32 %v1989, %v2010
        %v2018 = vadd.f32 %v1990, %v2010
        %v2019 = vadd.f32 %v1991, %v2015
        %v2020 = vadd.f32 %v1992, %v2015
        %v2021 = vadd.f32 %v1993, %v2010
        %v2022 = vadd.f32 %v1994, %v2010
        %v2023 = vadd.f32 %v1995, %v2015
        %v2024 = vadd.f32 %v1996, %v2015
        %v2025 = vadd.f32 %v1997, %v2010
        %v2026 = vadd.f32 %v1998, %v2010
        %v2027 = vadd.f32 %v1999, %v2015
        %v2028 = vadd.f32 %v2000, %v2015
        %v2029 = vadd.f32 %v2001, %v2010
        %v2030 = vadd.f32 %v2002, %v2010
        %v2031 = vadd.f32 %v2003, %v2015
        %v2032 = vadd.f32 %v2004, %v2015
        %v2033 = vxor.u32 %v2017, 2147483648
        %v2034 = vxor.u32 %v2018, 2147483648
        %v2035 = vxor.u32 %v2019, 2147483648
        %v2036 = vxor.u32 %v2020, 2147483648
        %v2037 = vxor.u32 %v2021, 2147483648
        %v2038 = vxor.u32 %v2022, 2147483648
        %v2039 = vxor.u32 %v2023, 2147483648
        %v2040 = vxor.u32 %v2024, 2147483648
        %v2041 = vxor.u32 %v2025, 2147483648
        %v2042 = vxor.u32 %v2026, 2147483648
        %v2043 = vxor.u32 %v2027, 2147483648
        %v2044 = vxor.u32 %v2028, 2147483648
        %v2045 = vxor.u32 %v2029, 2147483648
        %v2046 = vxor.u32 %v2030, 2147483648
        %v2047 = vxor.u32 %v2031, 2147483648
        %v2048 = vxor.u32 %v2032, 2147483648
        %v2049 = vmul.f32 %v2033, 1.442695
        %v2050 = vpow.pop %v2049
        %v2051 = vmul.f32 %v2034, 1.442695
        %v2052 = vpow.pop %v2051
        %v2053 = vmul.f32 %v2035, 1.442695
        %v2054 = vpow.pop %v2053
        %v2055 = vmul.f32 %v2036, 1.442695
        %v2056 = vpow.pop %v2055
        %v2057 = vmul.f32 %v2037, 1.442695
        %v2058 = vpow.pop %v2057
        %v2059 = vmul.f32 %v2038, 1.442695
        %v2060 = vpow.pop %v2059
        %v2061 = vmul.f32 %v2039, 1.442695
        %v2062 = vpow.pop %v2061
        %v2063 = vmul.f32 %v2040, 1.442695
        %v2064 = vpow.pop %v2063
        %v2065 = vmul.f32 %v2041, 1.442695
        %v2066 = vpow.pop %v2065
        %v2067 = vmul.f32 %v2042, 1.442695
        %v2068 = vpow.pop %v2067
        %v2069 = vmul.f32 %v2043, 1.442695
        %v2070 = vpow.pop %v2069
        %v2071 = vmul.f32 %v2044, 1.442695
        %v2072 = vpow.pop %v2071
        %v2073 = vmul.f32 %v2045, 1.442695
        %v2074 = vpow.pop %v2073
        %v2075 = vmul.f32 %v2046, 1.442695
        %v2076 = vpow.pop %v2075
        %v2077 = vmul.f32 %v2047, 1.442695
        %v2078 = vpow.pop %v2077
        %v2079 = vmul.f32 %v2048, 1.442695
        %v2080 = vpow.pop %v2079
        %v2081 = vadd.f32 %v2050, 1.0
        %v2082 = vadd.f32 %v2052, 1.0
        %v2083 = vadd.f32 %v2054, 1.0
        %v2084 = vadd.f32 %v2056, 1.0
        %v2085 = vadd.f32 %v2058, 1.0
        %v2086 = vadd.f32 %v2060, 1.0
        %v2087 = vadd.f32 %v2062, 1.0
        %v2088 = vadd.f32 %v2064, 1.0
        %v2089 = vadd.f32 %v2066, 1.0
        %v2090 = vadd.f32 %v2068, 1.0
        %v2091 = vadd.f32 %v2070, 1.0
        %v2092 = vadd.f32 %v2072, 1.0
        %v2093 = vadd.f32 %v2074, 1.0
        %v2094 = vadd.f32 %v2076, 1.0
        %v2095 = vadd.f32 %v2078, 1.0
        %v2096 = vadd.f32 %v2080, 1.0
        %v2097 = vrcp.pop %v2081
        %v2098 = vmul.f32 1.0, %v2097
        %v2099 = vrcp.pop %v2082
        %v2100 = vmul.f32 1.0, %v2099
        %v2101 = vrcp.pop %v2083
        %v2102 = vmul.f32 1.0, %v2101
        %v2103 = vrcp.pop %v2084
        %v2104 = vmul.f32 1.0, %v2103
        %v2105 = vrcp.pop %v2085
        %v2106 = vmul.f32 1.0, %v2105
        %v2107 = vrcp.pop %v2086
        %v2108 = vmul.f32 1.0, %v2107
        %v2109 = vrcp.pop %v2087
        %v2110 = vmul.f32 1.0, %v2109
        %v2111 = vrcp.pop %v2088
        %v2112 = vmul.f32 1.0, %v2111
        %v2113 = vrcp.pop %v2089
        %v2114 = vmul.f32 1.0, %v2113
        %v2115 = vrcp.pop %v2090
        %v2116 = vmul.f32 1.0, %v2115
        %v2117 = vrcp.pop %v2091
        %v2118 = vmul.f32 1.0, %v2117
        %v2119 = vrcp.pop %v2092
        %v2120 = vmul.f32 1.0, %v2119
        %v2121 = vrcp.pop %v2093
        %v2122 = vmul.f32 1.0, %v2121
        %v2123 = vrcp.pop %v2094
        %v2124 = vmul.f32 1.0, %v2123
        %v2125 = vrcp.pop %v2095
        %v2126 = vmul.f32 1.0, %v2125
        %v2127 = vrcp.pop %v2096
        %v2128 = vmul.f32 1.0, %v2127
        %v2129 = vmul.f32 %v2017, %v2098
        %v2130 = vmul.f32 %v2018, %v2100
        %v2131 = vmul.f32 %v2019, %v2102
        %v2132 = vmul.f32 %v2020, %v2104
        %v2133 = vmul.f32 %v2021, %v2106
        %v2134 = vmul.f32 %v2022, %v2108
        %v2135 = vmul.f32 %v2023, %v2110
        %v2136 = vmul.f32 %v2024, %v2112
        %v2137 = vmul.f32 %v2025, %v2114
        %v2138 = vmul.f32 %v2026, %v2116
        %v2139 = vmul.f32 %v2027, %v2118
        %v2140 = vmul.f32 %v2028, %v2120
        %v2141 = vmul.f32 %v2029, %v2122
        %v2142 = vmul.f32 %v2030, %v2124
        %v2143 = vmul.f32 %v2031, %v2126
        %v2144 = vmul.f32 %v2032, %v2128
        %v2145 = vpack.c.bf16 %v2131, %v2129
        %v2146 = vpack.c.bf16 %v2132, %v2130
        %v2147 = vpack.c.bf16 %v2135, %v2133
        %v2148 = vpack.c.bf16 %v2136, %v2134
        %v2149 = vpack.c.bf16 %v2139, %v2137
        %v2150 = vpack.c.bf16 %v2140, %v2138
        %v2151 = vpack.c.bf16 %v2143, %v2141
        %v2152 = vpack.c.bf16 %v2144, %v2142
        %v2161 = vunpack.c.l.b16 %v2145
        %v2162 = vunpack.c.l.b16 %v2146
        %v2163 = vunpack.c.h.b16 %v2145
        %v2164 = vunpack.c.h.b16 %v2146
        %v2165 = vunpack.c.l.b16 %v2147
        %v2166 = vunpack.c.l.b16 %v2148
        %v2167 = vunpack.c.h.b16 %v2147
        %v2168 = vunpack.c.h.b16 %v2148
        %v2169 = vunpack.c.l.b16 %v2149
        %v2170 = vunpack.c.l.b16 %v2150
        %v2171 = vunpack.c.h.b16 %v2149
        %v2172 = vunpack.c.h.b16 %v2150
        %v2173 = vunpack.c.l.b16 %v2151
        %v2174 = vunpack.c.l.b16 %v2152
        %v2175 = vunpack.c.h.b16 %v2151
        %v2176 = vunpack.c.h.b16 %v2152
        %v2177 = vpack.c.b16 %v2162, %v2161
        %v2178 = vpack.c.b16 %v2164, %v2163
        %v2179 = vpack.c.b16 %v2166, %v2165
        %v2180 = vpack.c.b16 %v2168, %v2167
        %v2181 = vpack.c.b16 %v2170, %v2169
        %v2182 = vpack.c.b16 %v2172, %v2171
        %v2183 = vpack.c.b16 %v2174, %v2173
        %v2184 = vpack.c.b16 %v2176, %v2175
        %2193 = vst [vmem:[%s366] sm:$0xff] %v2177
        %2194 = vst [vmem:[%s366 + $0x8] sm:$0xff] %v2178
        %2195 = vst [vmem:[%s366 + $0x10] sm:$0xff] %v2179
        %2196 = vst [vmem:[%s366 + $0x18] sm:$0xff] %v2180
        %2197 = vst [vmem:[%s366 + $0x20] sm:$0xff] %v2181
        %2198 = vst [vmem:[%s366 + $0x28] sm:$0xff] %v2182
        %2199 = vst [vmem:[%s366 + $0x30] sm:$0xff] %v2183
        %2200 = vst [vmem:[%s366 + $0x38] sm:$0xff] %v2184
        %s2201 = sand.u32 %s227, 1
        %s2202 = scalar_lea.sflag [#allocation4], %s2201
        %s2203 = sand.u32 %s227, 1
        %s2204 = smul.addr %s2203, 64
        %s2205 = scalar_lea.vmem [#allocation8], %s2204
        // Predicated region
        $region69: #{tpu_custom_call.1} parent=55 // pred_check
          %p2206 = pneg %p237
        $region70: #{tpu_custom_call.1} parent=55 // pred_check_branch
          %2208 = sbr.rel (%p2206) target = $region72
        $region71: #{tpu_custom_call.1} parent=55 // pred_region
          %s2209 = smul.u32 4, %s25
          %s2211 = ssub.s32 1024, 1024
          %2212 = vsyncadd %s2202, %s2211
          %s2213 = smul.addr %s2209, 4
          %s2214 = smul.addr %s2213, 64
          %s2215 = scalar_lea.hbm %s9, %s2214
          %s2216 = sshll.u32 %s2205, 4
          %s2217 = int_to_ptr.vmem [resolvable:$true] %s2216
          %2222 = dma.vmem_to_hbm [thread:$0]  %s2217, 1024, %s2215, %s2202, 128, 128, 8
        $region72: #{tpu_custom_call.1} parent=55 // pred_fallthru
          _
      $region56: #{tpu_custom_call.1} parent=5 // pred_fallthru
        _
      %p2223 = scmp.le.s32.totalorder 2, %s20
      // Predicated region
      $region73: #{tpu_custom_call.1} parent=5 // pred_check
        %p2224 = pneg %p2223
      $region74: #{tpu_custom_call.1} parent=5 // pred_check_branch
        %2226 = sbr.rel (%p2224) target = $region76
      $region75: #{tpu_custom_call.1} parent=5 // pred_region
        %s2227 = ssub.s32 %s20, 2
        // Predicated region
        $region77: #{tpu_custom_call.1} parent=75 // pred_check
          %p2228 = pneg %p243
        $region78: #{tpu_custom_call.1} parent=75 // pred_check_branch
          %2230 = sbr.rel (%p2228) target = $region80
        $region79: #{tpu_custom_call.1} parent=75 // pred_region
          %s2231 = sand.u32 %s228, 1
          %s2232 = scalar_lea.sflag [#allocation4], %s2231
          %s2233 = sand.u32 %s228, 1
          %s2234 = smul.addr %s2233, 64
          %s2235 = scalar_lea.vmem [#allocation8], %s2234
          %2236 = dma.done %s2232, 1024
        $region80: #{tpu_custom_call.1} parent=75 // pred_fallthru
          _
      $region76: #{tpu_custom_call.1} parent=5 // pred_fallthru
        _
    $region6: #{tpu_custom_call.1} parent=1 // loop_footer
      %s24 = sadd.s32 1, %s20
    $region7: #{tpu_custom_call.1} parent=1 // loop_footer_branch
      %19 = sbr.rel target = $region3
    $region8: #{tpu_custom_call.1} parent=1 // loop_exit
      _
    %2237 = vsyncpa [#allocation3], 1
    %s2238 = scalar_lea.sflag [#allocation3], 1
    %2239 = vsyncpa %s2238, 1
    %2240 = vsyncpa [#allocation6], 1
    %2241 = vsyncpa [#allocation4], 1
    %s2242 = scalar_lea.sflag [#allocation4], 1
    %2243 = vsyncpa %s2242, 1

</llo_original>
